<compile_context>
chip_gen: v7x
topology: tpu7x:2x2x1
jax: 0.10.0
libtpu: 0.0.40
codegen_flags: <defaults>
</compile_context>

<pallas_src>
import jax
import jax.numpy as jnp
from jax.experimental import pallas as pl
from jax.experimental.pallas import tpu as pltpu

_COORD_PAD = 8  # MXU contraction dim: [-2x, -2y, -2z, |x|^2, 0, 0, 0, 0]


def _round_up(n, m):
    return (n + m - 1) // m * m


def _default_tile_sizes():
    kind = ""
    try:
        kind = jax.devices()[0].device_kind.lower()
    except Exception:
        pass
    if "v5 lite" in kind or "v5e" in kind:
        return 256, 512     # v5e: single vst slot / slower MXU -> smaller tiles
    return 256, 1024        # v6e / v7x


# ----------------------------------------------------------------------------
# Fused kernel: batched 1-NN + dino-feature gather + seg_head linear
# ----------------------------------------------------------------------------
def _fused_knn_seghead_kernel(
        # scalar-prefetch refs (SMEM)
        qbmin_ref, qbmax_ref, dbmin_ref, dpure_ref, jlo_ref, jhi_ref,
        # tiled inputs (VMEM)
        q_ref,    # [tm, 8]   augmented query coords:   [x, y, z, 1, 0...]
        xt_ref,   # [8, tn]   augmented dino coords^T:  [-2x, -2y, -2z, |x|^2, 0...]
        bq_ref,   # [tm, 1]   query batch ids (padded rows -> last batch)
        bx_ref,   # [1, tn]   dino batch ids  (padded rows -> -1, never match)
        df_ref,   # [tn, Cd]  dino features (bf16)
        pf_ref,   # [tm, Cp]  backbone point features (bf16)
        wp_ref,   # [Cp, Kp]  seg_head weight, point-feature half (bf16)
        wd_ref,   # [Cd, Kp]  seg_head weight, dino-feature half (bf16)
        b_ref,    # [1, Kp]   seg_head bias (f32)
        # output
        out_ref,  # [tm, Kp]  logits (f32, lane-dense)
        # VMEM scratch
        min_scr,   # [tm, 1]  running min "distance" (|x|^2 - 2 q.x), f32
        gath_scr,  # [tm, Cd] running gathered dino feature, f32
):
    i = pl.program_id(0)
    j = pl.program_id(1)

    @pl.when(j == 0)
    def _():
        min_scr[...] = jnp.full(min_scr.shape, jnp.inf, min_scr.dtype)
        gath_scr[...] = jnp.zeros(gath_scr.shape, gath_scr.dtype)

    # Points are offset-sorted: the dino tiles intersecting query tile i's
    # batch range form the contiguous window [jlo[i], jhi[i]].
    overlap = jnp.logical_and(j >= jlo_ref[i], j <= jhi_ref[i])
    # Interior tile pairs (both tiles single-batch & same batch, no dino
    # padding) skip the bq==bx mask entirely.
    pure = jnp.logical_and(
        jnp.logical_and(qbmin_ref[i] == qbmax_ref[i], dpure_ref[j] == 1),
        qbmin_ref[i] == dbmin_ref[j])

    def dist_mxu():
        # |x|^2 - 2 q.x folded entirely into the padded K=8 MXU contraction
        # (|q|^2 dropped: constant per query row, argmin-invariant).
        return jnp.dot(q_ref[...], xt_ref[...],
                       preferred_element_type=jnp.float32)

    def merge(dist):
        tn_sz = dist.shape[-1]
        tile_min = jnp.min(dist, axis=-1, keepdims=True)               # [tm,1]
        col = jax.lax.broadcasted_iota(jnp.int32, (1, tn_sz), 1)       # [1,tn]
        amin = jnp.min(jnp.where(dist == tile_min, col, tn_sz),
                       axis=-1, keepdims=True)                         # [tm,1]
        # Gather the tile winner's dino feature on the MXU (one-hot matmul).
        onehot = (col == amin).astype(df_ref.dtype)                    # [tm,tn]
        tile_gather = jnp.dot(onehot, df_ref[...],
                              preferred_element_type=jnp.float32)      # [tm,Cd]
        # Strict '<' keeps the global first-index tie rule across tiles.
        improved = tile_min < min_scr[...]                             # [tm,1]
        min_scr[...] = jnp.where(improved, tile_min, min_scr[...])
        gath_scr[...] = jnp.where(improved, tile_gather, gath_scr[...])

    @pl.when(jnp.logical_and(overlap, pure))
    def _():
        merge(dist_mxu())                                   # unmasked fast path

    @pl.when(jnp.logical_and(overlap, jnp.logical_not(pure)))
    def _():
        merge(jnp.where(bq_ref[...] == bx_ref[...], dist_mxu(), jnp.inf))

    @pl.when(j == pl.num_programs(1) - 1)
    def _():
        # seg_head(concat([point_feat, dino_feat[idx]], -1)), concat folded
        # into two split matmuls; bf16 operands, f32 accumulation.
        logits = jnp.dot(pf_ref[...], wp_ref[...],
                         preferred_element_type=jnp.float32)
        logits = logits + jnp.dot(gath_scr[...].astype(wd_ref.dtype),
                                  wd_ref[...],
                                  preferred_element_type=jnp.float32)
        out_ref[...] = (logits + b_ref[...]).astype(out_ref.dtype)


# ----------------------------------------------------------------------------
# Wrapper
# ----------------------------------------------------------------------------
def dino_enhanced_segmentor_forward(input_dict, seg_w, seg_b, *, tm=None, tn=None):
    point_feat = input_dict["point_feat"]   # synthetic backbone output (see TODO)
    origin_coord = input_dict["origin_coord"]
    origin_offset = input_dict["origin_offset"]
    dino_coord = input_dict["dino_coord"]
    dino_feat = input_dict["dino_feat"]
    dino_offset = input_dict["dino_offset"]

    Np, Cp = point_feat.shape
    Nd, Cd = dino_feat.shape
    K = seg_w.shape[0]
    assert seg_w.shape[1] == Cp + Cd

    d_tm, d_tn = _default_tile_sizes()
    tm = d_tm if tm is None else tm
    tn = d_tn if tn is None else tn
    # v7x: keep >= 2 query tiles so both TensorCores get work on the parallel axis.
    while tm > 8 and pl.cdiv(Np, tm) < 2:
        tm = max(8, (tm // 2 + 7) // 8 * 8)

    Np_p = _round_up(Np, tm)
    Nd_p = _round_up(Nd, tn)
    Kp = _round_up(K, 128)          # lane-dense output (unmasked stores)
    nti, ntj = Np_p // tm, Nd_p // tn
    nb_q = origin_offset.shape[0]
    nb_d = dino_offset.shape[0]

    # ---- batch ids -----------------------------------------------------
    qi = jnp.arange(Np_p, dtype=jnp.int32)
    by_raw = jnp.searchsorted(origin_offset.astype(jnp.int32), qi,
                              side="right").astype(jnp.int32)
    by_p = jnp.minimum(by_raw, nb_q - 1)   # padded query rows -> last batch (tight ranges)

    di = jnp.arange(Nd_p, dtype=jnp.int32)
    bx_raw = jnp.searchsorted(dino_offset.astype(jnp.int32), di,
                              side="right").astype(jnp.int32)
    bx_mask = jnp.where(di < Nd, bx_raw, -1)     # mask sentinel: never matches a query
    bx_rng = jnp.minimum(bx_raw, nb_d - 1)       # tight per-tile ranges

    # ---- per-tile ranges, purity flags, dino tile window ----------------
    qbmin = by_p.reshape(nti, tm).min(axis=1).astype(jnp.int32)
    qbmax = by_p.reshape(nti, tm).max(axis=1).astype(jnp.int32)
    dbmin = bx_rng.reshape(ntj, tn).min(axis=1).astype(jnp.int32)
    dbmax = bx_rng.reshape(ntj, tn).max(axis=1).astype(jnp.int32)
    d_nopad = (jnp.arange(1, ntj + 1, dtype=jnp.int32) * tn) <= Nd
    dpure = jnp.logical_and(d_nopad, dbmin == dbmax).astype(jnp.int32)

    # Contiguous dino-tile window per query tile (dbmin/dbmax are nondecreasing).
    jlo = jnp.searchsorted(dbmax, qbmin, side="left").astype(jnp.int32)
    jhi = (jnp.searchsorted(dbmin, qbmax, side="right") - 1).astype(jnp.int32)
    jlo = jnp.clip(jlo, 0, ntj - 1)
    jhi = jnp.maximum(jnp.clip(jhi, 0, ntj - 1), jlo)

    # ---- augmented coordinates: distance folded into the MXU contraction ----
    q3 = jnp.pad(origin_coord.astype(jnp.float32), ((0, Np_p - Np), (0, 0)))
    q_aug = jnp.concatenate(
        [q3, jnp.ones((Np_p, 1), jnp.float32),
         jnp.zeros((Np_p, _COORD_PAD - 4), jnp.float32)], axis=1)      # [Np_p, 8]

    x3 = jnp.pad(dino_coord.astype(jnp.float32), ((0, Nd_p - Nd), (0, 0)))
    x2 = jnp.sum(x3 * x3, axis=1, keepdims=True)
    xt_aug = jnp.concatenate(
        [-2.0 * x3, x2, jnp.zeros((Nd_p, _COORD_PAD - 4), jnp.float32)],
        axis=1).T                                                      # [8, Nd_p]

    # ---- features / seg_head params (bf16 into the MXU, f32 accumulation) ----
    pf = jnp.pad(point_feat.astype(jnp.float32),
                 ((0, Np_p - Np), (0, 0))).astype(jnp.bfloat16)
    df = jnp.pad(dino_feat.astype(jnp.float32),
                 ((0, Nd_p - Nd), (0, 0))).astype(jnp.bfloat16)
    wp = jnp.pad(seg_w[:, :Cp].T.astype(jnp.float32),
                 ((0, 0), (0, Kp - K))).astype(jnp.bfloat16)
    wd = jnp.pad(seg_w[:, Cp:].T.astype(jnp.float32),
                 ((0, 0), (0, Kp - K))).astype(jnp.bfloat16)
    bias = jnp.pad(seg_b.astype(jnp.float32), (0, Kp - K)).reshape(1, Kp)

    # ---- index maps (scalar-prefetch refs arrive as trailing positional args) ----
    def q_map(i, j, *_):
        return (i, 0)

    def const_map(i, j, *_):
        return (0, 0)

    def dino_col_map(i, j, *s):
        jlo_r, jhi_r = s[4], s[5]
        return (0, jnp.maximum(jnp.minimum(j, jhi_r[i]), jlo_r[i]))

    def dino_row_map(i, j, *s):
        jlo_r, jhi_r = s[4], s[5]
        return (jnp.maximum(jnp.minimum(j, jhi_r[i]), jlo_r[i]), 0)

    grid_spec = pltpu.PrefetchScalarGridSpec(
        num_scalar_prefetch=6,
        grid=(nti, ntj),
        in_specs=[
            pl.BlockSpec((tm, _COORD_PAD), q_map),          # q_aug
            pl.BlockSpec((_COORD_PAD, tn), dino_col_map),   # xt_aug
            pl.BlockSpec((tm, 1), q_map),                   # bq
            pl.BlockSpec((1, tn), dino_col_map),            # bx
            pl.BlockSpec((tn, Cd), dino_row_map),           # dino feat
            pl.BlockSpec((tm, Cp), q_map),                  # point feat
            pl.BlockSpec((Cp, Kp), const_map),              # Wp
            pl.BlockSpec((Cd, Kp), const_map),              # Wd
            pl.BlockSpec((1, Kp), const_map),               # bias
        ],
        out_specs=pl.BlockSpec((tm, Kp), q_map),
        scratch_shapes=[pltpu.VMEM((tm, 1), jnp.float32),
                        pltpu.VMEM((tm, Cd), jnp.float32)],
    )

    out = pl.pallas_call(
        _fused_knn_seghead_kernel,
        out_shape=jax.ShapeDtypeStruct((Np_p, Kp), jnp.float32),
        grid_spec=grid_spec,
        compiler_params=pltpu.CompilerParams(
            dimension_semantics=("parallel", "arbitrary")),
    )(qbmin, qbmax, dbmin, dpure, jlo, jhi,
      q_aug, xt_aug,
      by_p.reshape(Np_p, 1), bx_mask.reshape(1, Nd_p),
      df, pf, wp, wd, bias)

    # The padded buffer is also returned so downstream consumers can avoid the
    # post-kernel slice copy (logits for classes >= K / rows >= Np are padding).
    return {"seg_logits": out[:Np, :K], "seg_logits_padded": out}


# ----------------------------------------------------------------------------
# Pure-JAX reference (same numerics: q-norm-dropped distance, bf16 features)
# ----------------------------------------------------------------------------
def reference_forward(input_dict, seg_w, seg_b):
    pc = input_dict["origin_coord"].astype(jnp.float32)
    dc = input_dict["dino_coord"].astype(jnp.float32)
    Np, Nd = pc.shape[0], dc.shape[0]
    by = jnp.searchsorted(input_dict["origin_offset"].astype(jnp.int32),
                          jnp.arange(Np, dtype=jnp.int32), side="right")
    bx = jnp.searchsorted(input_dict["dino_offset"].astype(jnp.int32),
                          jnp.arange(Nd, dtype=jnp.int32), side="right")
    d = jnp.sum(dc * dc, axis=-1)[None, :] - 2.0 * pc @ dc.T
    d = jnp.where(by[:, None] == bx[None, :], d, jnp.inf)
    idx = jnp.argmin(d, axis=-1)
    pf = input_dict["point_feat"].astype(jnp.bfloat16)
    df = input_dict["dino_feat"].astype(jnp.bfloat16)[idx]
    Cp = pf.shape[1]
    w = seg_w.astype(jnp.bfloat16)
    return (jnp.dot(pf, w[:, :Cp].T, preferred_element_type=jnp.float32)
            + jnp.dot(df, w[:, Cp:].T, preferred_element_type=jnp.float32)
            + seg_b[None, :].astype(jnp.float32))


if __name__ == "__main__":
    key = jax.random.PRNGKey(0)
    k1, k2, k3, k4, k5, k6 = jax.random.split(key, 6)

    # Small but multi-tile shapes (2 batches), tm=64 / tn=128 -> grid (4, 3):
    # exercises init, running-min merge, the pure fast path, the masked
    # boundary path, the cross-batch tile skip + DMA clamp, and the final
    # seg_head write on the last dino tile.
    Np, Nd = 200, 384
    Cp, Cd = 32, 16
    num_classes = 13
    backbone_out_channels = Cp + Cd

    input_dict = {
        # TODO(synk): `point_feat` stands in for the external backbone output.
        "point_feat": jax.random.normal(k1, (Np, Cp), jnp.float32),
        # Integer lattice coordinates keep distances exactly representable, so
        # the kernel and the reference agree bit-exactly on the 1-NN winner.
        "origin_coord": jax.random.randint(k2, (Np, 3), 0, 8).astype(jnp.float32),
        "origin_offset": jnp.array([120, 200], jnp.int32),
        "dino_coord": jax.random.randint(k3, (Nd, 3), 0, 8).astype(jnp.float32),
        "dino_feat": jax.random.normal(k4, (Nd, Cd), jnp.float32),
        "dino_offset": jnp.array([200, 384], jnp.int32),
    }

    # Deterministic seg_head parameters (nn.Linear(backbone_out_channels, K))
    bound = 1.0 / (backbone_out_channels ** 0.5)
    seg_w = jax.random.uniform(k5, (num_classes, backbone_out_channels),
                               jnp.float32, -bound, bound)
    seg_b = jax.random.uniform(k6, (num_classes,), jnp.float32, -bound, bound)

    out = dino_enhanced_segmentor_forward(input_dict, seg_w, seg_b, tm=64, tn=128)
    seg_logits = jax.block_until_ready(out["seg_logits"])

    ref = reference_forward(input_dict, seg_w, seg_b)
    assert seg_logits.shape == (Np, num_classes)
    max_err = float(jnp.max(jnp.abs(seg_logits - ref)))
    assert jnp.allclose(seg_logits, ref, atol=1e-3, rtol=1e-3), max_err
    print("KERNEL_OK")
</pallas_src>

<mosaic_0001>
module attributes {stable_mosaic.version = 11 : i64} {
  func.func @_fused_knn_seghead_kernel(%arg0: i32, %arg1: i32, %arg2: memref<4xi32, #tpu.memory_space<smem>>, %arg3: memref<4xi32, #tpu.memory_space<smem>>, %arg4: memref<3xi32, #tpu.memory_space<smem>>, %arg5: memref<3xi32, #tpu.memory_space<smem>>, %arg6: memref<4xi32, #tpu.memory_space<smem>>, %arg7: memref<4xi32, #tpu.memory_space<smem>>, %arg8: memref<64x8xf32, #tpu.memory_space<vmem>>, %arg9: memref<8x128xf32, #tpu.memory_space<vmem>>, %arg10: memref<64x1xi32, #tpu.memory_space<vmem>>, %arg11: memref<1x128xi32, #tpu.memory_space<vmem>>, %arg12: memref<128x16xbf16, #tpu.memory_space<vmem>>, %arg13: memref<64x32xbf16, #tpu.memory_space<vmem>>, %arg14: memref<32x128xbf16, #tpu.memory_space<vmem>>, %arg15: memref<16x128xbf16, #tpu.memory_space<vmem>>, %arg16: memref<1x128xf32, #tpu.memory_space<vmem>>, %arg17: memref<64x128xf32, #tpu.memory_space<vmem>>, %arg18: memref<64x1xf32, #tpu.memory_space<vmem>>, %arg19: memref<64x16xf32, #tpu.memory_space<vmem>>) attributes {dimension_semantics = [#tpu.dimension_semantics<parallel>, #tpu.dimension_semantics<arbitrary>], iteration_bounds = array<i64: 4, 3>, scalar_prefetch = 6 : i64, scratch_operands = 2 : i64, tpu.core_type = #tpu.core_type<tc>, window_params = [{transform_indices = @transform_0, window_bounds = array<i64: 64, 8>}, {transform_indices = @transform_1, window_bounds = array<i64: 8, 128>}, {transform_indices = @transform_2, window_bounds = array<i64: 64, 1>}, {transform_indices = @transform_3, window_bounds = array<i64: 1, 128>}, {transform_indices = @transform_4, window_bounds = array<i64: 128, 16>}, {transform_indices = @transform_5, window_bounds = array<i64: 64, 32>}, {pipeline_mode = #tpu.pipeline_mode<synchronous>, transform_indices = @transform_6, window_bounds = array<i64: 32, 128>}, {pipeline_mode = #tpu.pipeline_mode<synchronous>, transform_indices = @transform_7, window_bounds = array<i64: 16, 128>}, {pipeline_mode = #tpu.pipeline_mode<synchronous>, transform_indices = @transform_8, window_bounds = array<i64: 1, 128>}, {transform_indices = @transform_9, window_bounds = array<i64: 64, 128>}]} {
    %c0_i32 = arith.constant 0 : i32
    %0 = arith.cmpi eq, %arg1, %c0_i32 : i32
    %1 = arith.extui %0 : i1 to i32
    %c0_i32_0 = arith.constant 0 : i32
    %2 = arith.cmpi ne, %1, %c0_i32_0 : i32
    scf.if %2 {
      %cst = arith.constant 0x7F800000 : f32
      %35 = vector.broadcast %cst : f32 to vector<64x1xf32>
      %c0 = arith.constant 0 : index
      %c0_4 = arith.constant 0 : index
      %36 = vector.load %arg18[%c0, %c0_4] : memref<64x1xf32, #tpu.memory_space<vmem>>, vector<64x1xf32>
      tpu.vector_store %arg18[%c0, %c0_4], %35 {strides = array<i32>} : memref<64x1xf32, #tpu.memory_space<vmem>>, vector<64x1xf32>,
      %cst_5 = arith.constant 0.000000e+00 : f32
      %37 = vector.broadcast %cst_5 : f32 to vector<64x16xf32>
      %c0_6 = arith.constant 0 : index
      %c0_7 = arith.constant 0 : index
      %38 = vector.load %arg19[%c0_6, %c0_7] : memref<64x16xf32, #tpu.memory_space<vmem>>, vector<64x16xf32>
      tpu.vector_store %arg19[%c0_6, %c0_7], %37 {strides = array<i32>} : memref<64x16xf32, #tpu.memory_space<vmem>>, vector<64x16xf32>,
    } else {
    }
    %3 = arith.index_cast %arg0 : i32 to index
    %4 = memref.load %arg6[%3] : memref<4xi32, #tpu.memory_space<smem>>
    %5 = arith.cmpi sge, %arg1, %4 : i32
    %6 = arith.index_cast %arg0 : i32 to index
    %7 = memref.load %arg7[%6] : memref<4xi32, #tpu.memory_space<smem>>
    %8 = arith.cmpi sle, %arg1, %7 : i32
    %9 = arith.andi %5, %8 : i1
    %10 = arith.index_cast %arg0 : i32 to index
    %11 = memref.load %arg2[%10] : memref<4xi32, #tpu.memory_space<smem>>
    %12 = arith.index_cast %arg0 : i32 to index
    %13 = memref.load %arg3[%12] : memref<4xi32, #tpu.memory_space<smem>>
    %14 = arith.cmpi eq, %11, %13 : i32
    %15 = arith.index_cast %arg1 : i32 to index
    %16 = memref.load %arg5[%15] : memref<3xi32, #tpu.memory_space<smem>>
    %c1_i32 = arith.constant 1 : i32
    %17 = arith.cmpi eq, %16, %c1_i32 : i32
    %18 = arith.andi %14, %17 : i1
    %19 = arith.index_cast %arg0 : i32 to index
    %20 = memref.load %arg2[%19] : memref<4xi32, #tpu.memory_space<smem>>
    %21 = arith.index_cast %arg1 : i32 to index
    %22 = memref.load %arg4[%21] : memref<3xi32, #tpu.memory_space<smem>>
    %23 = arith.cmpi eq, %20, %22 : i32
    %24 = arith.andi %18, %23 : i1
    %25 = arith.andi %9, %24 : i1
    %26 = arith.extui %25 : i1 to i32
    %c0_i32_1 = arith.constant 0 : i32
    %27 = arith.cmpi ne, %26, %c0_i32_1 : i32
    scf.if %27 {
      %c0 = arith.constant 0 : index
      %c0_4 = arith.constant 0 : index
      %35 = vector.load %arg8[%c0, %c0_4] : memref<64x8xf32, #tpu.memory_space<vmem>>, vector<64x8xf32>
      %c0_5 = arith.constant 0 : index
      %c0_6 = arith.constant 0 : index
      %36 = vector.load %arg9[%c0_5, %c0_6] : memref<8x128xf32, #tpu.memory_space<vmem>>, vector<8x128xf32>
      %cst = arith.constant dense<0.000000e+00> : vector<64x128xf32>
      %37 = tpu.matmul %35, %36, %cst {dimension_numbers = #tpu.dot_dimension_numbers<[1], [0], [0], [1], [0, 0, 1, 1], [], []>} : vector<64x8xf32>, vector<8x128xf32>, vector<64x128xf32> -> vector<64x128xf32>
      %cst_7 = arith.constant dense<0x7F800000> : vector<64xf32>
      %38 = vector.multi_reduction <minimumf>, %37, %cst_7 [1] : vector<64x128xf32> to vector<64xf32>
      %39 = vector.shape_cast %38 : vector<64xf32> to vector<64x1xf32>
      %40 = tpu.iota {dimensions = array<i32: 1>} : vector<1x128xi32>
      %41 = vector.broadcast %39 : vector<64x1xf32> to vector<64x128xf32>
      %42 = arith.cmpf oeq, %37, %41 : vector<64x128xf32>
      %c128_i32 = arith.constant 128 : i32
      %43 = vector.shape_cast %40 : vector<1x128xi32> to vector<1x128xi32>
      %44 = vector.broadcast %43 : vector<1x128xi32> to vector<64x128xi32>
      %45 = vector.broadcast %c128_i32 : i32 to vector<64x128xi32>
      %46 = arith.select %42, %44, %45 : vector<64x128xi1>, vector<64x128xi32>
      %cst_8 = arith.constant dense<2147483647> : vector<64xi32>
      %47 = vector.multi_reduction <minsi>, %46, %cst_8 [1] : vector<64x128xi32> to vector<64xi32>
      %48 = vector.shape_cast %47 : vector<64xi32> to vector<64x1xi32>
      %49 = vector.broadcast %40 : vector<1x128xi32> to vector<64x128xi32>
      %50 = vector.broadcast %48 : vector<64x1xi32> to vector<64x128xi32>
      %51 = arith.cmpi eq, %49, %50 : vector<64x128xi32>
      %52 = arith.extui %51 : vector<64x128xi1> to vector<64x128xi32>
      %53 = arith.sitofp %52 : vector<64x128xi32> to vector<64x128xf32>
      %54 = arith.truncf %53 : vector<64x128xf32> to vector<64x128xbf16>
      %c0_9 = arith.constant 0 : index
      %c0_10 = arith.constant 0 : index
      %55 = vector.load %arg12[%c0_9, %c0_10] : memref<128x16xbf16, #tpu.memory_space<vmem>>, vector<128x16xbf16>
      %cst_11 = arith.constant dense<0.000000e+00> : vector<64x16xf32>
      %56 = tpu.matmul %54, %55, %cst_11 {dimension_numbers = #tpu.dot_dimension_numbers<[1], [0], [0], [1], [0, 0, 1, 1], [], []>} : vector<64x128xbf16>, vector<128x16xbf16>, vector<64x16xf32> -> vector<64x16xf32>
      %c0_12 = arith.constant 0 : index
      %c0_13 = arith.constant 0 : index
      %57 = vector.load %arg18[%c0_12, %c0_13] : memref<64x1xf32, #tpu.memory_space<vmem>>, vector<64x1xf32>
      %58 = arith.cmpf olt, %39, %57 : vector<64x1xf32>
      %c0_14 = arith.constant 0 : index
      %c0_15 = arith.constant 0 : index
      %59 = vector.load %arg18[%c0_14, %c0_15] : memref<64x1xf32, #tpu.memory_space<vmem>>, vector<64x1xf32>
      %60 = arith.select %58, %39, %59 : vector<64x1xi1>, vector<64x1xf32>
      %c0_16 = arith.constant 0 : index
      %c0_17 = arith.constant 0 : index
      %61 = vector.load %arg18[%c0_16, %c0_17] : memref<64x1xf32, #tpu.memory_space<vmem>>, vector<64x1xf32>
      tpu.vector_store %arg18[%c0_16, %c0_17], %60 {strides = array<i32>} : memref<64x1xf32, #tpu.memory_space<vmem>>, vector<64x1xf32>,
      %c0_18 = arith.constant 0 : index
      %c0_19 = arith.constant 0 : index
      %62 = vector.load %arg19[%c0_18, %c0_19] : memref<64x16xf32, #tpu.memory_space<vmem>>, vector<64x16xf32>
      %63 = vector.shape_cast %58 : vector<64x1xi1> to vector<64x1xi1>
      %64 = vector.broadcast %63 : vector<64x1xi1> to vector<64x16xi1>
      %65 = arith.select %64, %56, %62 : vector<64x16xi1>, vector<64x16xf32>
      %c0_20 = arith.constant 0 : index
      %c0_21 = arith.constant 0 : index
      %66 = vector.load %arg19[%c0_20, %c0_21] : memref<64x16xf32, #tpu.memory_space<vmem>>, vector<64x16xf32>
      tpu.vector_store %arg19[%c0_20, %c0_21], %65 {strides = array<i32>} : memref<64x16xf32, #tpu.memory_space<vmem>>, vector<64x16xf32>,
    } else {
    }
    %true = arith.constant true
    %28 = arith.xori %24, %true : i1
    %29 = arith.andi %9, %28 : i1
    %30 = arith.extui %29 : i1 to i32
    %c0_i32_2 = arith.constant 0 : i32
    %31 = arith.cmpi ne, %30, %c0_i32_2 : i32
    scf.if %31 {
      %c0 = arith.constant 0 : index
      %c0_4 = arith.constant 0 : index
      %35 = vector.load %arg10[%c0, %c0_4] : memref<64x1xi32, #tpu.memory_space<vmem>>, vector<64x1xi32>
      %c0_5 = arith.constant 0 : index
      %c0_6 = arith.constant 0 : index
      %36 = vector.load %arg11[%c0_5, %c0_6] : memref<1x128xi32, #tpu.memory_space<vmem>>, vector<1x128xi32>
      %37 = vector.broadcast %35 : vector<64x1xi32> to vector<64x128xi32>
      %38 = vector.broadcast %36 : vector<1x128xi32> to vector<64x128xi32>
      %39 = arith.cmpi eq, %37, %38 : vector<64x128xi32>
      %c0_7 = arith.constant 0 : index
      %c0_8 = arith.constant 0 : index
      %40 = vector.load %arg8[%c0_7, %c0_8] : memref<64x8xf32, #tpu.memory_space<vmem>>, vector<64x8xf32>
      %c0_9 = arith.constant 0 : index
      %c0_10 = arith.constant 0 : index
      %41 = vector.load %arg9[%c0_9, %c0_10] : memref<8x128xf32, #tpu.memory_space<vmem>>, vector<8x128xf32>
      %cst = arith.constant dense<0.000000e+00> : vector<64x128xf32>
      %42 = tpu.matmul %40, %41, %cst {dimension_numbers = #tpu.dot_dimension_numbers<[1], [0], [0], [1], [0, 0, 1, 1], [], []>} : vector<64x8xf32>, vector<8x128xf32>, vector<64x128xf32> -> vector<64x128xf32>
      %cst_11 = arith.constant 0x7F800000 : f32
      %43 = vector.broadcast %cst_11 : f32 to vector<64x128xf32>
      %44 = arith.select %39, %42, %43 : vector<64x128xi1>, vector<64x128xf32>
      %cst_12 = arith.constant dense<0x7F800000> : vector<64xf32>
      %45 = vector.multi_reduction <minimumf>, %44, %cst_12 [1] : vector<64x128xf32> to vector<64xf32>
      %46 = vector.shape_cast %45 : vector<64xf32> to vector<64x1xf32>
      %47 = tpu.iota {dimensions = array<i32: 1>} : vector<1x128xi32>
      %48 = vector.broadcast %46 : vector<64x1xf32> to vector<64x128xf32>
      %49 = arith.cmpf oeq, %44, %48 : vector<64x128xf32>
      %c128_i32 = arith.constant 128 : i32
      %50 = vector.shape_cast %47 : vector<1x128xi32> to vector<1x128xi32>
      %51 = vector.broadcast %50 : vector<1x128xi32> to vector<64x128xi32>
      %52 = vector.broadcast %c128_i32 : i32 to vector<64x128xi32>
      %53 = arith.select %49, %51, %52 : vector<64x128xi1>, vector<64x128xi32>
      %cst_13 = arith.constant dense<2147483647> : vector<64xi32>
      %54 = vector.multi_reduction <minsi>, %53, %cst_13 [1] : vector<64x128xi32> to vector<64xi32>
      %55 = vector.shape_cast %54 : vector<64xi32> to vector<64x1xi32>
      %56 = vector.broadcast %47 : vector<1x128xi32> to vector<64x128xi32>
      %57 = vector.broadcast %55 : vector<64x1xi32> to vector<64x128xi32>
      %58 = arith.cmpi eq, %56, %57 : vector<64x128xi32>
      %59 = arith.extui %58 : vector<64x128xi1> to vector<64x128xi32>
      %60 = arith.sitofp %59 : vector<64x128xi32> to vector<64x128xf32>
      %61 = arith.truncf %60 : vector<64x128xf32> to vector<64x128xbf16>
      %c0_14 = arith.constant 0 : index
      %c0_15 = arith.constant 0 : index
      %62 = vector.load %arg12[%c0_14, %c0_15] : memref<128x16xbf16, #tpu.memory_space<vmem>>, vector<128x16xbf16>
      %cst_16 = arith.constant dense<0.000000e+00> : vector<64x16xf32>
      %63 = tpu.matmul %61, %62, %cst_16 {dimension_numbers = #tpu.dot_dimension_numbers<[1], [0], [0], [1], [0, 0, 1, 1], [], []>} : vector<64x128xbf16>, vector<128x16xbf16>, vector<64x16xf32> -> vector<64x16xf32>
      %c0_17 = arith.constant 0 : index
      %c0_18 = arith.constant 0 : index
      %64 = vector.load %arg18[%c0_17, %c0_18] : memref<64x1xf32, #tpu.memory_space<vmem>>, vector<64x1xf32>
      %65 = arith.cmpf olt, %46, %64 : vector<64x1xf32>
      %c0_19 = arith.constant 0 : index
      %c0_20 = arith.constant 0 : index
      %66 = vector.load %arg18[%c0_19, %c0_20] : memref<64x1xf32, #tpu.memory_space<vmem>>, vector<64x1xf32>
      %67 = arith.select %65, %46, %66 : vector<64x1xi1>, vector<64x1xf32>
      %c0_21 = arith.constant 0 : index
      %c0_22 = arith.constant 0 : index
      %68 = vector.load %arg18[%c0_21, %c0_22] : memref<64x1xf32, #tpu.memory_space<vmem>>, vector<64x1xf32>
      tpu.vector_store %arg18[%c0_21, %c0_22], %67 {strides = array<i32>} : memref<64x1xf32, #tpu.memory_space<vmem>>, vector<64x1xf32>,
      %c0_23 = arith.constant 0 : index
      %c0_24 = arith.constant 0 : index
      %69 = vector.load %arg19[%c0_23, %c0_24] : memref<64x16xf32, #tpu.memory_space<vmem>>, vector<64x16xf32>
      %70 = vector.shape_cast %65 : vector<64x1xi1> to vector<64x1xi1>
      %71 = vector.broadcast %70 : vector<64x1xi1> to vector<64x16xi1>
      %72 = arith.select %71, %63, %69 : vector<64x16xi1>, vector<64x16xf32>
      %c0_25 = arith.constant 0 : index
      %c0_26 = arith.constant 0 : index
      %73 = vector.load %arg19[%c0_25, %c0_26] : memref<64x16xf32, #tpu.memory_space<vmem>>, vector<64x16xf32>
      tpu.vector_store %arg19[%c0_25, %c0_26], %72 {strides = array<i32>} : memref<64x16xf32, #tpu.memory_space<vmem>>, vector<64x16xf32>,
    } else {
    }
    %c2_i32 = arith.constant 2 : i32
    %32 = arith.cmpi eq, %arg1, %c2_i32 : i32
    %33 = arith.extui %32 : i1 to i32
    %c0_i32_3 = arith.constant 0 : i32
    %34 = arith.cmpi ne, %33, %c0_i32_3 : i32
    scf.if %34 {
      %c0 = arith.constant 0 : index
      %c0_4 = arith.constant 0 : index
      %35 = vector.load %arg13[%c0, %c0_4] : memref<64x32xbf16, #tpu.memory_space<vmem>>, vector<64x32xbf16>
      %c0_5 = arith.constant 0 : index
      %c0_6 = arith.constant 0 : index
      %36 = vector.load %arg14[%c0_5, %c0_6] : memref<32x128xbf16, #tpu.memory_space<vmem>>, vector<32x128xbf16>
      %cst = arith.constant dense<0.000000e+00> : vector<64x128xf32>
      %37 = tpu.matmul %35, %36, %cst {dimension_numbers = #tpu.dot_dimension_numbers<[1], [0], [0], [1], [0, 0, 1, 1], [], []>} : vector<64x32xbf16>, vector<32x128xbf16>, vector<64x128xf32> -> vector<64x128xf32>
      %c0_7 = arith.constant 0 : index
      %c0_8 = arith.constant 0 : index
      %38 = vector.load %arg19[%c0_7, %c0_8] : memref<64x16xf32, #tpu.memory_space<vmem>>, vector<64x16xf32>
      %39 = arith.truncf %38 : vector<64x16xf32> to vector<64x16xbf16>
      %c0_9 = arith.constant 0 : index
      %c0_10 = arith.constant 0 : index
      %40 = vector.load %arg15[%c0_9, %c0_10] : memref<16x128xbf16, #tpu.memory_space<vmem>>, vector<16x128xbf16>
      %cst_11 = arith.constant dense<0.000000e+00> : vector<64x128xf32>
      %41 = tpu.matmul %39, %40, %cst_11 {dimension_numbers = #tpu.dot_dimension_numbers<[1], [0], [0], [1], [0, 0, 1, 1], [], []>} : vector<64x16xbf16>, vector<16x128xbf16>, vector<64x128xf32> -> vector<64x128xf32>
      %42 = arith.addf %37, %41 : vector<64x128xf32>
      %c0_12 = arith.constant 0 : index
      %c0_13 = arith.constant 0 : index
      %43 = vector.load %arg16[%c0_12, %c0_13] : memref<1x128xf32, #tpu.memory_space<vmem>>, vector<1x128xf32>
      %44 = vector.broadcast %43 : vector<1x128xf32> to vector<64x128xf32>
      %45 = arith.addf %42, %44 : vector<64x128xf32>
      %c0_14 = arith.constant 0 : index
      %c0_15 = arith.constant 0 : index
      %46 = vector.load %arg17[%c0_14, %c0_15] : memref<64x128xf32, #tpu.memory_space<vmem>>, vector<64x128xf32>
      tpu.vector_store %arg17[%c0_14, %c0_15], %45 {strides = array<i32>} : memref<64x128xf32, #tpu.memory_space<vmem>>, vector<64x128xf32>,
    } else {
    }
    return
  }
  func.func @transform_0(%arg0: i32, %arg1: i32, %arg2: memref<4xi32, #tpu.memory_space<smem>>, %arg3: memref<4xi32, #tpu.memory_space<smem>>, %arg4: memref<3xi32, #tpu.memory_space<smem>>, %arg5: memref<3xi32, #tpu.memory_space<smem>>, %arg6: memref<4xi32, #tpu.memory_space<smem>>, %arg7: memref<4xi32, #tpu.memory_space<smem>>) -> (i32, i32) {
    %c0_i32 = arith.constant 0 : i32
    %c0_i32_0 = arith.constant 0 : i32
    return %arg0, %c0_i32 : i32, i32
  }
  func.func @transform_1(%arg0: i32, %arg1: i32, %arg2: memref<4xi32, #tpu.memory_space<smem>>, %arg3: memref<4xi32, #tpu.memory_space<smem>>, %arg4: memref<3xi32, #tpu.memory_space<smem>>, %arg5: memref<3xi32, #tpu.memory_space<smem>>, %arg6: memref<4xi32, #tpu.memory_space<smem>>, %arg7: memref<4xi32, #tpu.memory_space<smem>>) -> (i32, i32) {
    %0 = arith.index_cast %arg0 : i32 to index
    %1 = memref.load %arg7[%0] : memref<4xi32, #tpu.memory_space<smem>>
    %2 = arith.minsi %arg1, %1 : i32
    %3 = arith.index_cast %arg0 : i32 to index
    %4 = memref.load %arg6[%3] : memref<4xi32, #tpu.memory_space<smem>>
    %5 = arith.maxsi %2, %4 : i32
    %c0_i32 = arith.constant 0 : i32
    %c0_i32_0 = arith.constant 0 : i32
    return %c0_i32, %5 : i32, i32
  }
  func.func @transform_2(%arg0: i32, %arg1: i32, %arg2: memref<4xi32, #tpu.memory_space<smem>>, %arg3: memref<4xi32, #tpu.memory_space<smem>>, %arg4: memref<3xi32, #tpu.memory_space<smem>>, %arg5: memref<3xi32, #tpu.memory_space<smem>>, %arg6: memref<4xi32, #tpu.memory_space<smem>>, %arg7: memref<4xi32, #tpu.memory_space<smem>>) -> (i32, i32) {
    %c0_i32 = arith.constant 0 : i32
    %c0_i32_0 = arith.constant 0 : i32
    return %arg0, %c0_i32 : i32, i32
  }
  func.func @transform_3(%arg0: i32, %arg1: i32, %arg2: memref<4xi32, #tpu.memory_space<smem>>, %arg3: memref<4xi32, #tpu.memory_space<smem>>, %arg4: memref<3xi32, #tpu.memory_space<smem>>, %arg5: memref<3xi32, #tpu.memory_space<smem>>, %arg6: memref<4xi32, #tpu.memory_space<smem>>, %arg7: memref<4xi32, #tpu.memory_space<smem>>) -> (i32, i32) {
    %0 = arith.index_cast %arg0 : i32 to index
    %1 = memref.load %arg7[%0] : memref<4xi32, #tpu.memory_space<smem>>
    %2 = arith.minsi %arg1, %1 : i32
    %3 = arith.index_cast %arg0 : i32 to index
    %4 = memref.load %arg6[%3] : memref<4xi32, #tpu.memory_space<smem>>
    %5 = arith.maxsi %2, %4 : i32
    %c0_i32 = arith.constant 0 : i32
    %c0_i32_0 = arith.constant 0 : i32
    return %c0_i32, %5 : i32, i32
  }
  func.func @transform_4(%arg0: i32, %arg1: i32, %arg2: memref<4xi32, #tpu.memory_space<smem>>, %arg3: memref<4xi32, #tpu.memory_space<smem>>, %arg4: memref<3xi32, #tpu.memory_space<smem>>, %arg5: memref<3xi32, #tpu.memory_space<smem>>, %arg6: memref<4xi32, #tpu.memory_space<smem>>, %arg7: memref<4xi32, #tpu.memory_space<smem>>) -> (i32, i32) {
    %0 = arith.index_cast %arg0 : i32 to index
    %1 = memref.load %arg7[%0] : memref<4xi32, #tpu.memory_space<smem>>
    %2 = arith.minsi %arg1, %1 : i32
    %3 = arith.index_cast %arg0 : i32 to index
    %4 = memref.load %arg6[%3] : memref<4xi32, #tpu.memory_space<smem>>
    %5 = arith.maxsi %2, %4 : i32
    %c0_i32 = arith.constant 0 : i32
    %c0_i32_0 = arith.constant 0 : i32
    return %5, %c0_i32 : i32, i32
  }
  func.func @transform_5(%arg0: i32, %arg1: i32, %arg2: memref<4xi32, #tpu.memory_space<smem>>, %arg3: memref<4xi32, #tpu.memory_space<smem>>, %arg4: memref<3xi32, #tpu.memory_space<smem>>, %arg5: memref<3xi32, #tpu.memory_space<smem>>, %arg6: memref<4xi32, #tpu.memory_space<smem>>, %arg7: memref<4xi32, #tpu.memory_space<smem>>) -> (i32, i32) {
    %c0_i32 = arith.constant 0 : i32
    %c0_i32_0 = arith.constant 0 : i32
    return %arg0, %c0_i32 : i32, i32
  }
  func.func @transform_6(%arg0: i32, %arg1: i32, %arg2: memref<4xi32, #tpu.memory_space<smem>>, %arg3: memref<4xi32, #tpu.memory_space<smem>>, %arg4: memref<3xi32, #tpu.memory_space<smem>>, %arg5: memref<3xi32, #tpu.memory_space<smem>>, %arg6: memref<4xi32, #tpu.memory_space<smem>>, %arg7: memref<4xi32, #tpu.memory_space<smem>>) -> (i32, i32) {
    %c0_i32 = arith.constant 0 : i32
    %c0_i32_0 = arith.constant 0 : i32
    %c0_i32_1 = arith.constant 0 : i32
    return %c0_i32, %c0_i32_0 : i32, i32
  }
  func.func @transform_7(%arg0: i32, %arg1: i32, %arg2: memref<4xi32, #tpu.memory_space<smem>>, %arg3: memref<4xi32, #tpu.memory_space<smem>>, %arg4: memref<3xi32, #tpu.memory_space<smem>>, %arg5: memref<3xi32, #tpu.memory_space<smem>>, %arg6: memref<4xi32, #tpu.memory_space<smem>>, %arg7: memref<4xi32, #tpu.memory_space<smem>>) -> (i32, i32) {
    %c0_i32 = arith.constant 0 : i32
    %c0_i32_0 = arith.constant 0 : i32
    %c0_i32_1 = arith.constant 0 : i32
    return %c0_i32, %c0_i32_0 : i32, i32
  }
  func.func @transform_8(%arg0: i32, %arg1: i32, %arg2: memref<4xi32, #tpu.memory_space<smem>>, %arg3: memref<4xi32, #tpu.memory_space<smem>>, %arg4: memref<3xi32, #tpu.memory_space<smem>>, %arg5: memref<3xi32, #tpu.memory_space<smem>>, %arg6: memref<4xi32, #tpu.memory_space<smem>>, %arg7: memref<4xi32, #tpu.memory_space<smem>>) -> (i32, i32) {
    %c0_i32 = arith.constant 0 : i32
    %c0_i32_0 = arith.constant 0 : i32
    %c0_i32_1 = arith.constant 0 : i32
    return %c0_i32, %c0_i32_0 : i32, i32
  }
  func.func @transform_9(%arg0: i32, %arg1: i32, %arg2: memref<4xi32, #tpu.memory_space<smem>>, %arg3: memref<4xi32, #tpu.memory_space<smem>>, %arg4: memref<3xi32, #tpu.memory_space<smem>>, %arg5: memref<3xi32, #tpu.memory_space<smem>>, %arg6: memref<4xi32, #tpu.memory_space<smem>>, %arg7: memref<4xi32, #tpu.memory_space<smem>>) -> (i32, i32) {
    %c0_i32 = arith.constant 0 : i32
    %c0_i32_0 = arith.constant 0 : i32
    return %arg0, %c0_i32 : i32, i32
  }
}

</mosaic_0001>

<llo_original>
// kernel: tpu_custom_call.1
$region0: #{tpu_custom_call.1}
  #allocation0 [shape = 'u32[]', space=smem, size = 0x4, offset = 0x4, fixed_abs, tag = 'smem constant byte address 0x4 - core index']
  #allocation1 [shape = 'u32[144,128]{1,0:T(1,128)}', space=vmem, size = 0x12000, scoped, tag = 'internal scratch']
  #allocation2 [shape = 'f32[64,1]{1,0:T(8,128)}', space=vmem, size = 0x8000, scoped, tag = 'scratch operand']
  #allocation3 [shape = 'f32[64,16]{1,0:T(8,128)}', space=vmem, size = 0x8000, scoped, tag = 'scratch operand']
  #allocation4 [shape = 's32[1]{0}', space=sflag, size = 0x4, scoped, tag = 'scoped memory for tpu_custom_call.1']
  #allocation5 [shape = 'u8[512]{0}', space=smem, size = 0x200, scoped, tag = 'prefetched SMEM operand 0']
  #allocation6 [shape = 'u8[512]{0}', space=smem, size = 0x200, scoped, tag = 'prefetched SMEM operand 1']
  #allocation7 [shape = 'u8[512]{0}', space=smem, size = 0x200, scoped, tag = 'prefetched SMEM operand 2']
  #allocation8 [shape = 'u8[512]{0}', space=smem, size = 0x200, scoped, tag = 'prefetched SMEM operand 3']
  #allocation9 [shape = 'u8[512]{0}', space=smem, size = 0x200, scoped, tag = 'prefetched SMEM operand 4']
  #allocation10 [shape = 'u8[512]{0}', space=smem, size = 0x200, scoped, tag = 'prefetched SMEM operand 5']
  %s0 = inlined_call_operand.vmem [shape: s32[4], index: 0, kind: input, shape index: {}]
  %s1 = inlined_call_operand.vmem [shape: s32[4], index: 1, kind: input, shape index: {}]
  %s2 = inlined_call_operand.vmem [shape: s32[3], index: 2, kind: input, shape index: {}]
  %s3 = inlined_call_operand.vmem [shape: s32[3], index: 3, kind: input, shape index: {}]
  %s4 = inlined_call_operand.vmem [shape: s32[4], index: 4, kind: input, shape index: {}]
  %s5 = inlined_call_operand.vmem [shape: s32[4], index: 5, kind: input, shape index: {}]
  %s6 = inlined_call_operand.vmem [shape: f32[256,8], index: 6, kind: input, shape index: {}]
  %s7 = inlined_call_operand.vmem [shape: f32[8,384], index: 7, kind: input, shape index: {}]
  %s8 = inlined_call_operand.vmem [shape: s32[256,1], index: 8, kind: input, shape index: {}]
  %s9 = inlined_call_operand.vmem [shape: s32[1,384], index: 9, kind: input, shape index: {}]
  %s10 = inlined_call_operand.vmem [shape: bf16[384,16], index: 10, kind: input, shape index: {}]
  %s11 = inlined_call_operand.vmem [shape: bf16[256,32], index: 11, kind: input, shape index: {}]
  %s12 = inlined_call_operand.vmem [shape: bf16[32,128], index: 12, kind: input, shape index: {}]
  %s13 = inlined_call_operand.vmem [shape: bf16[16,128], index: 13, kind: input, shape index: {}]
  %s14 = inlined_call_operand.vmem [shape: f32[1,128], index: 14, kind: input, shape index: {}]
  %s15 = inlined_call_operand.hbm [shape: f32[256,128], index: 15, kind: output, shape index: {}]
  %s16 = sld [smem:[#allocation0]]
  $region85: #{tpu_custom_call.1} parent=0
    _
  %s18 = ssub.s32 1, %s16
  %s19 = scalar_select 0, %s18, %s16
  %s20 = sshll.u32 %s0, 4
  %s21 = int_to_ptr.vmem [resolvable:$true] %s20
  %23 = dma.vmem_to_smem %s21, 16, [#allocation5], [#allocation4]
  %s24 = sshll.u32 %s1, 4
  %s25 = int_to_ptr.vmem [resolvable:$true] %s24
  %27 = dma.vmem_to_smem %s25, 16, [#allocation6], [#allocation4]
  %s28 = sshll.u32 %s2, 4
  %s29 = int_to_ptr.vmem [resolvable:$true] %s28
  %31 = dma.vmem_to_smem %s29, 16, [#allocation7], [#allocation4]
  %s32 = sshll.u32 %s3, 4
  %s33 = int_to_ptr.vmem [resolvable:$true] %s32
  %35 = dma.vmem_to_smem %s33, 16, [#allocation8], [#allocation4]
  %s36 = sshll.u32 %s4, 4
  %s37 = int_to_ptr.vmem [resolvable:$true] %s36
  %39 = dma.vmem_to_smem %s37, 16, [#allocation9], [#allocation4]
  %s40 = sshll.u32 %s5, 4
  %s41 = int_to_ptr.vmem [resolvable:$true] %s40
  %43 = dma.vmem_to_smem %s41, 16, [#allocation10], [#allocation4]
  %44 = dma.done [#allocation4], 96
  %45 = sfence
  $region1: #{tpu_custom_call.1} parent=0
    #allocation11 [shape = 'u8[65536]{0}', space=vmem, size = 0x10000, scoped, tag = 'output window, operand 0']
    #allocation12 [shape = 's32[2]{0}', space=sflag, size = 0x8, scoped, tag = 'scoped memory for tpu_custom_call.1']
    %46 = vsyncpa [#allocation12], 0
    %s47 = scalar_lea.sflag [#allocation12], 1
    %48 = vsyncpa %s47, 0
    loop: start=0, step=1, limit=14
    $region2: #{tpu_custom_call.1} parent=1 // loop_pre_header
      _
    $region3: #{tpu_custom_call.1} parent=1 // loop_header
      %s50 = sphi 0, %s54
      %p51 = scmp.ge.s32.totalorder %s50, 14
      %s57 = sphi 0, %s69
      %s58 = sphi 0, %s65
      %s59 = sphi 0, %s57
      %s60 = sphi 0, %s58
      %s61 = sphi 0, %s59
      %s62 = sphi 0, %s60
      %s72 = sphi 0, %s74
      %s75 = sphi 0, %s72
      %s76 = sphi 0, %s75
      %s92 = sphi 0, %s76
      %s110 = sphi 0, %s112
      %s113 = sphi 0, %s110
      %s114 = sphi 0, %s113
      %s130 = sphi 0, %s114
      %s136 = sphi 0, %s138
      %s139 = sphi 0, %s136
      %s140 = sphi 0, %s139
      %s156 = sphi 0, %s140
      %s174 = sphi 0, %s176
      %s177 = sphi 0, %s174
      %s178 = sphi 0, %s177
      %s194 = sphi 0, %s178
      %s212 = sphi 0, %s214
      %s215 = sphi 0, %s212
      %s216 = sphi 0, %s215
      %s232 = sphi 0, %s216
      %s238 = sphi 0, %s240
      %s241 = sphi 0, %s238
      %s242 = sphi 0, %s241
      %s258 = sphi 0, %s242
      %s262 = sphi 0, %s262
      %s264 = sphi 0, %s262
      %s265 = sphi 0, %s264
      %s279 = sphi 0, %s265
      %s283 = sphi 0, %s283
      %s285 = sphi 0, %s283
      %s286 = sphi 0, %s285
      %s300 = sphi 0, %s286
      %s304 = sphi 0, %s304
      %s306 = sphi 0, %s304
      %s307 = sphi 0, %s306
      %s321 = sphi 0, %s307
      %s327 = sphi 0, %s329
      %s330 = sphi 0, %s327
      %s331 = sphi 0, %s330
      %s347 = sphi 0, %s331
    $region4: #{tpu_custom_call.1} parent=1 // loop_header_branch
      %53 = sbr.rel (%p51) target = $region8
    $region5: #{tpu_custom_call.1} parent=1 // loop_body
      %s55 = ssub.s32 %s50, 1
      %s56 = ssub.s32 %s50, 2
      %s63 = sadd.s32 1, %s58
      %p64 = scmp.ge.s32.totalorder %s63, 3
      %s65 = scalar_select %p64, 0, %s63
      %s66 = sadd.s32 1, %s57
      %s67 = scalar_select %p64, %s66, %s57
      %p68 = scmp.ge.s32.totalorder %s67, 4
      %s69 = scalar_select %p68, 0, %s67
      %s70 = ssub.s32 %s57, %s69
      %p71 = scmp.eq.s32.totalorder %s70, 0
      %s73 = sadd.s32 %s72, 1
      %s74 = scalar_select %p71, %s72, %s73
      %p77 = pneg %p71
      %p78 = scmp.eq.s32.totalorder %s50, 11
      %p79 = por %p77, %p78
      %p80 = scmp.ne.s32.totalorder %s72, %s75
      %p81 = scmp.eq.s32.totalorder %s50, 0
      %p82 = por %p80, %p81
      %p83 = scmp.ne.s32.totalorder %s72, %s75
      %p84 = scmp.eq.s32.totalorder %s55, 11
      %p85 = por %p83, %p84
      %p86 = scmp.ne.s32.totalorder %s75, %s76
      %p87 = scmp.eq.s32.totalorder %s55, 0
      %p88 = por %p86, %p87
      %p89 = scmp.ne.s32.totalorder %s75, %s76
      %p90 = scmp.eq.s32.totalorder %s56, 11
      %p91 = por %p89, %p90
      %p93 = scmp.ne.s32.totalorder %s76, %s92
      %p94 = scmp.eq.s32.totalorder %s56, 0
      %p95 = por %p93, %p94
      %s96 = sld [smem:[#allocation10 + %s57]]
      %p97 = scmp.lt.s32.totalorder %s58, %s96
      %s98 = scalar_select %p97, %s58, %s96
      %s99 = sld [smem:[#allocation9 + %s57]]
      %p100 = scmp.gt.s32.totalorder %s98, %s99
      %s101 = scalar_select %p100, %s98, %s99
      %s102 = sld [smem:[#allocation10 + %s69]]
      %p103 = scmp.lt.s32.totalorder %s65, %s102
      %s104 = scalar_select %p103, %s65, %s102
      %s105 = sld [smem:[#allocation9 + %s69]]
      %p106 = scmp.gt.s32.totalorder %s104, %s105
      %s107 = scalar_select %p106, %s104, %s105
      %s108 = ssub.s32 %s101, %s107
      %p109 = scmp.eq.s32.totalorder %s108, 0
      %s111 = sadd.s32 %s110, 1
      %s112 = scalar_select %p109, %s110, %s111
      %p115 = pneg %p109
      %p116 = scmp.eq.s32.totalorder %s50, 11
      %p117 = por %p115, %p116
      %p118 = scmp.ne.s32.totalorder %s110, %s113
      %p119 = scmp.eq.s32.totalorder %s50, 0
      %p120 = por %p118, %p119
      %p121 = scmp.ne.s32.totalorder %s110, %s113
      %p122 = scmp.eq.s32.totalorder %s55, 11
      %p123 = por %p121, %p122
      %p124 = scmp.ne.s32.totalorder %s113, %s114
      %p125 = scmp.eq.s32.totalorder %s55, 0
      %p126 = por %p124, %p125
      %p127 = scmp.ne.s32.totalorder %s113, %s114
      %p128 = scmp.eq.s32.totalorder %s56, 11
      %p129 = por %p127, %p128
      %p131 = scmp.ne.s32.totalorder %s114, %s130
      %p132 = scmp.eq.s32.totalorder %s56, 0
      %p133 = por %p131, %p132
      %s134 = ssub.s32 %s57, %s69
      %p135 = scmp.eq.s32.totalorder %s134, 0
      %s137 = sadd.s32 %s136, 1
      %s138 = scalar_select %p135, %s136, %s137
      %p141 = pneg %p135
      %p142 = scmp.eq.s32.totalorder %s50, 11
      %p143 = por %p141, %p142
      %p144 = scmp.ne.s32.totalorder %s136, %s139
      %p145 = scmp.eq.s32.totalorder %s50, 0
      %p146 = por %p144, %p145
      %p147 = scmp.ne.s32.totalorder %s136, %s139
      %p148 = scmp.eq.s32.totalorder %s55, 11
      %p149 = por %p147, %p148
      %p150 = scmp.ne.s32.totalorder %s139, %s140
      %p151 = scmp.eq.s32.totalorder %s55, 0
      %p152 = por %p150, %p151
      %p153 = scmp.ne.s32.totalorder %s139, %s140
      %p154 = scmp.eq.s32.totalorder %s56, 11
      %p155 = por %p153, %p154
      %p157 = scmp.ne.s32.totalorder %s140, %s156
      %p158 = scmp.eq.s32.totalorder %s56, 0
      %p159 = por %p157, %p158
      %s160 = sld [smem:[#allocation10 + %s57]]
      %p161 = scmp.lt.s32.totalorder %s58, %s160
      %s162 = scalar_select %p161, %s58, %s160
      %s163 = sld [smem:[#allocation9 + %s57]]
      %p164 = scmp.gt.s32.totalorder %s162, %s163
      %s165 = scalar_select %p164, %s162, %s163
      %s166 = sld [smem:[#allocation10 + %s69]]
      %p167 = scmp.lt.s32.totalorder %s65, %s166
      %s168 = scalar_select %p167, %s65, %s166
      %s169 = sld [smem:[#allocation9 + %s69]]
      %p170 = scmp.gt.s32.totalorder %s168, %s169
      %s171 = scalar_select %p170, %s168, %s169
      %s172 = ssub.s32 %s165, %s171
      %p173 = scmp.eq.s32.totalorder %s172, 0
      %s175 = sadd.s32 %s174, 1
      %s176 = scalar_select %p173, %s174, %s175
      %p179 = pneg %p173
      %p180 = scmp.eq.s32.totalorder %s50, 11
      %p181 = por %p179, %p180
      %p182 = scmp.ne.s32.totalorder %s174, %s177
      %p183 = scmp.eq.s32.totalorder %s50, 0
      %p184 = por %p182, %p183
      %p185 = scmp.ne.s32.totalorder %s174, %s177
      %p186 = scmp.eq.s32.totalorder %s55, 11
      %p187 = por %p185, %p186
      %p188 = scmp.ne.s32.totalorder %s177, %s178
      %p189 = scmp.eq.s32.totalorder %s55, 0
      %p190 = por %p188, %p189
      %p191 = scmp.ne.s32.totalorder %s177, %s178
      %p192 = scmp.eq.s32.totalorder %s56, 11
      %p193 = por %p191, %p192
      %p195 = scmp.ne.s32.totalorder %s178, %s194
      %p196 = scmp.eq.s32.totalorder %s56, 0
      %p197 = por %p195, %p196
      %s198 = sld [smem:[#allocation10 + %s57]]
      %p199 = scmp.lt.s32.totalorder %s58, %s198
      %s200 = scalar_select %p199, %s58, %s198
      %s201 = sld [smem:[#allocation9 + %s57]]
      %p202 = scmp.gt.s32.totalorder %s200, %s201
      %s203 = scalar_select %p202, %s200, %s201
      %s204 = sld [smem:[#allocation10 + %s69]]
      %p205 = scmp.lt.s32.totalorder %s65, %s204
      %s206 = scalar_select %p205, %s65, %s204
      %s207 = sld [smem:[#allocation9 + %s69]]
      %p208 = scmp.gt.s32.totalorder %s206, %s207
      %s209 = scalar_select %p208, %s206, %s207
      %s210 = ssub.s32 %s203, %s209
      %p211 = scmp.eq.s32.totalorder %s210, 0
      %s213 = sadd.s32 %s212, 1
      %s214 = scalar_select %p211, %s212, %s213
      %p217 = pneg %p211
      %p218 = scmp.eq.s32.totalorder %s50, 11
      %p219 = por %p217, %p218
      %p220 = scmp.ne.s32.totalorder %s212, %s215
      %p221 = scmp.eq.s32.totalorder %s50, 0
      %p222 = por %p220, %p221
      %p223 = scmp.ne.s32.totalorder %s212, %s215
      %p224 = scmp.eq.s32.totalorder %s55, 11
      %p225 = por %p223, %p224
      %p226 = scmp.ne.s32.totalorder %s215, %s216
      %p227 = scmp.eq.s32.totalorder %s55, 0
      %p228 = por %p226, %p227
      %p229 = scmp.ne.s32.totalorder %s215, %s216
      %p230 = scmp.eq.s32.totalorder %s56, 11
      %p231 = por %p229, %p230
      %p233 = scmp.ne.s32.totalorder %s216, %s232
      %p234 = scmp.eq.s32.totalorder %s56, 0
      %p235 = por %p233, %p234
      %s236 = ssub.s32 %s57, %s69
      %p237 = scmp.eq.s32.totalorder %s236, 0
      %s239 = sadd.s32 %s238, 1
      %s240 = scalar_select %p237, %s238, %s239
      %p243 = pneg %p237
      %p244 = scmp.eq.s32.totalorder %s50, 11
      %p245 = por %p243, %p244
      %p246 = scmp.ne.s32.totalorder %s238, %s241
      %p247 = scmp.eq.s32.totalorder %s50, 0
      %p248 = por %p246, %p247
      %p249 = scmp.ne.s32.totalorder %s238, %s241
      %p250 = scmp.eq.s32.totalorder %s55, 11
      %p251 = por %p249, %p250
      %p252 = scmp.ne.s32.totalorder %s241, %s242
      %p253 = scmp.eq.s32.totalorder %s55, 0
      %p254 = por %p252, %p253
      %p255 = scmp.ne.s32.totalorder %s241, %s242
      %p256 = scmp.eq.s32.totalorder %s56, 11
      %p257 = por %p255, %p256
      %p259 = scmp.ne.s32.totalorder %s242, %s258
      %p260 = scmp.eq.s32.totalorder %s56, 0
      %p261 = por %p259, %p260
      %s263 = sadd.s32 %s262, 1
      %p266 = scmp.eq.s32.totalorder %s50, 11
      %p267 = scmp.ne.s32.totalorder %s262, %s264
      %p268 = scmp.eq.s32.totalorder %s50, 0
      %p269 = por %p267, %p268
      %p270 = scmp.ne.s32.totalorder %s262, %s264
      %p271 = scmp.eq.s32.totalorder %s55, 11
      %p272 = por %p270, %p271
      %p273 = scmp.ne.s32.totalorder %s264, %s265
      %p274 = scmp.eq.s32.totalorder %s55, 0
      %p275 = por %p273, %p274
      %p276 = scmp.ne.s32.totalorder %s264, %s265
      %p277 = scmp.eq.s32.totalorder %s56, 11
      %p278 = por %p276, %p277
      %p280 = scmp.ne.s32.totalorder %s265, %s279
      %p281 = scmp.eq.s32.totalorder %s56, 0
      %p282 = por %p280, %p281
      %s284 = sadd.s32 %s283, 1
      %p287 = scmp.eq.s32.totalorder %s50, 11
      %p288 = scmp.ne.s32.totalorder %s283, %s285
      %p289 = scmp.eq.s32.totalorder %s50, 0
      %p290 = por %p288, %p289
      %p291 = scmp.ne.s32.totalorder %s283, %s285
      %p292 = scmp.eq.s32.totalorder %s55, 11
      %p293 = por %p291, %p292
      %p294 = scmp.ne.s32.totalorder %s285, %s286
      %p295 = scmp.eq.s32.totalorder %s55, 0
      %p296 = por %p294, %p295
      %p297 = scmp.ne.s32.totalorder %s285, %s286
      %p298 = scmp.eq.s32.totalorder %s56, 11
      %p299 = por %p297, %p298
      %p301 = scmp.ne.s32.totalorder %s286, %s300
      %p302 = scmp.eq.s32.totalorder %s56, 0
      %p303 = por %p301, %p302
      %s305 = sadd.s32 %s304, 1
      %p308 = scmp.eq.s32.totalorder %s50, 11
      %p309 = scmp.ne.s32.totalorder %s304, %s306
      %p310 = scmp.eq.s32.totalorder %s50, 0
      %p311 = por %p309, %p310
      %p312 = scmp.ne.s32.totalorder %s304, %s306
      %p313 = scmp.eq.s32.totalorder %s55, 11
      %p314 = por %p312, %p313
      %p315 = scmp.ne.s32.totalorder %s306, %s307
      %p316 = scmp.eq.s32.totalorder %s55, 0
      %p317 = por %p315, %p316
      %p318 = scmp.ne.s32.totalorder %s306, %s307
      %p319 = scmp.eq.s32.totalorder %s56, 11
      %p320 = por %p318, %p319
      %p322 = scmp.ne.s32.totalorder %s307, %s321
      %p323 = scmp.eq.s32.totalorder %s56, 0
      %p324 = por %p322, %p323
      %s325 = ssub.s32 %s57, %s69
      %p326 = scmp.eq.s32.totalorder %s325, 0
      %s328 = sadd.s32 %s327, 1
      %s329 = scalar_select %p326, %s327, %s328
      %p332 = pneg %p326
      %p333 = scmp.eq.s32.totalorder %s50, 11
      %p334 = por %p332, %p333
      %p335 = scmp.ne.s32.totalorder %s327, %s330
      %p336 = scmp.eq.s32.totalorder %s50, 0
      %p337 = por %p335, %p336
      %p338 = scmp.ne.s32.totalorder %s327, %s330
      %p339 = scmp.eq.s32.totalorder %s55, 11
      %p340 = por %p338, %p339
      %p341 = scmp.ne.s32.totalorder %s330, %s331
      %p342 = scmp.eq.s32.totalorder %s55, 0
      %p343 = por %p341, %p342
      %p344 = scmp.ne.s32.totalorder %s330, %s331
      %p345 = scmp.eq.s32.totalorder %s56, 11
      %p346 = por %p344, %p345
      %p348 = scmp.ne.s32.totalorder %s331, %s347
      %p349 = scmp.eq.s32.totalorder %s56, 0
      %p350 = por %p348, %p349
      %p351 = scmp.le.s32.totalorder 1, %s50
      %p352 = scmp.lt.s32.totalorder %s50, 13
      %p353 = pnand %p351, %p352
      %p354 = pneg %p353
      // Predicated region
      $region9: #{tpu_custom_call.1} parent=5 // pred_check
        _
      $region10: #{tpu_custom_call.1} parent=5 // pred_check_branch
        %356 = sbr.rel (%p353) target = $region12
      $region11: #{tpu_custom_call.1} parent=5 // pred_region
        %s357 = ssub.s32 %s50, 1
        // Predicated region
        $region13: #{tpu_custom_call.1} parent=11 // pred_check
          %p358 = pneg %p275
        $region14: #{tpu_custom_call.1} parent=11 // pred_check_branch
          %360 = sbr.rel (%p358) target = $region16
        $region15: #{tpu_custom_call.1} parent=11 // pred_region
          _
        $region16: #{tpu_custom_call.1} parent=11 // pred_fallthru
          _
        // Predicated region
        $region17: #{tpu_custom_call.1} parent=11 // pred_check
          %p361 = pneg %p296
        $region18: #{tpu_custom_call.1} parent=11 // pred_check_branch
          %363 = sbr.rel (%p361) target = $region20
        $region19: #{tpu_custom_call.1} parent=11 // pred_region
          _
        $region20: #{tpu_custom_call.1} parent=11 // pred_fallthru
          _
        // Predicated region
        $region21: #{tpu_custom_call.1} parent=11 // pred_check
          %p364 = pneg %p317
        $region22: #{tpu_custom_call.1} parent=11 // pred_check_branch
          %366 = sbr.rel (%p364) target = $region24
        $region23: #{tpu_custom_call.1} parent=11 // pred_region
          _
        $region24: #{tpu_custom_call.1} parent=11 // pred_fallthru
          _
      $region12: #{tpu_custom_call.1} parent=5 // pred_fallthru
        _
      %p367 = scmp.lt.s32.totalorder %s50, 12
      // Predicated region
      $region25: #{tpu_custom_call.1} parent=5 // pred_check
        %p368 = pneg %p367
      $region26: #{tpu_custom_call.1} parent=5 // pred_check_branch
        %370 = sbr.rel (%p368) target = $region28
      $region27: #{tpu_custom_call.1} parent=5 // pred_region
        // Predicated region
        $region29: #{tpu_custom_call.1} parent=27 // pred_check
          %p371 = pneg %p82
        $region30: #{tpu_custom_call.1} parent=27 // pred_check_branch
          %373 = sbr.rel (%p371) target = $region32
        $region31: #{tpu_custom_call.1} parent=27 // pred_region
          %s374 = smul.u32 8, %s57
          %p375 = scmp.lt.s32.totalorder %s374, 31
          %s376 = scalar_select %p375, %s374, 31
          %s377 = smul.addr %s376, 8
          %s378 = scalar_lea.vmem %s6, %s377
          %s379 = smul.u32 8, %s57
        $region32: #{tpu_custom_call.1} parent=27 // pred_fallthru
          _
        // Predicated region
        $region33: #{tpu_custom_call.1} parent=27 // pred_check
          %p380 = pneg %p120
        $region34: #{tpu_custom_call.1} parent=27 // pred_check_branch
          %382 = sbr.rel (%p380) target = $region36
        $region35: #{tpu_custom_call.1} parent=27 // pred_region
          %s383 = sld [smem:[#allocation10 + %s57]]
          %p384 = scmp.lt.s32.totalorder %s58, %s383
          %s385 = scalar_select %p384, %s58, %s383
          %s386 = sld [smem:[#allocation9 + %s57]]
          %p387 = scmp.gt.s32.totalorder %s385, %s386
          %s388 = scalar_select %p387, %s385, %s386
          %p389 = scmp.lt.s32.totalorder %s388, 2
          %s390 = scalar_select %p389, %s388, 2
          %s391 = smul.addr %s390, 8
          %s392 = scalar_lea.vmem %s7, %s391
          %s393 = sld [smem:[#allocation10 + %s57]]
          %p394 = scmp.lt.s32.totalorder %s58, %s393
          %s395 = scalar_select %p394, %s58, %s393
          %s396 = sld [smem:[#allocation9 + %s57]]
          %p397 = scmp.gt.s32.totalorder %s395, %s396
          %s398 = scalar_select %p397, %s395, %s396
        $region36: #{tpu_custom_call.1} parent=27 // pred_fallthru
          _
        // Predicated region
        $region37: #{tpu_custom_call.1} parent=27 // pred_check
          %p399 = pneg %p146
        $region38: #{tpu_custom_call.1} parent=27 // pred_check_branch
          %401 = sbr.rel (%p399) target = $region40
        $region39: #{tpu_custom_call.1} parent=27 // pred_region
          %s402 = smul.u32 8, %s57
          %p403 = scmp.lt.s32.totalorder %s402, 31
          %s404 = scalar_select %p403, %s402, 31
          %s405 = smul.addr %s404, 8
          %s406 = scalar_lea.vmem %s8, %s405
          %s407 = smul.u32 8, %s57
        $region40: #{tpu_custom_call.1} parent=27 // pred_fallthru
          _
        // Predicated region
        $region41: #{tpu_custom_call.1} parent=27 // pred_check
          %p408 = pneg %p184
        $region42: #{tpu_custom_call.1} parent=27 // pred_check_branch
          %410 = sbr.rel (%p408) target = $region44
        $region43: #{tpu_custom_call.1} parent=27 // pred_region
          %s411 = sld [smem:[#allocation10 + %s57]]
          %p412 = scmp.lt.s32.totalorder %s58, %s411
          %s413 = scalar_select %p412, %s58, %s411
          %s414 = sld [smem:[#allocation9 + %s57]]
          %p415 = scmp.gt.s32.totalorder %s413, %s414
          %s416 = scalar_select %p415, %s413, %s414
          %p417 = scmp.lt.s32.totalorder %s416, 2
          %s418 = scalar_select %p417, %s416, 2
          %s419 = scalar_lea.vmem %s9, %s418
          %s420 = sld [smem:[#allocation10 + %s57]]
          %p421 = scmp.lt.s32.totalorder %s58, %s420
          %s422 = scalar_select %p421, %s58, %s420
          %s423 = sld [smem:[#allocation9 + %s57]]
          %p424 = scmp.gt.s32.totalorder %s422, %s423
          %s425 = scalar_select %p424, %s422, %s423
        $region44: #{tpu_custom_call.1} parent=27 // pred_fallthru
          _
        // Predicated region
        $region45: #{tpu_custom_call.1} parent=27 // pred_check
          %p426 = pneg %p222
        $region46: #{tpu_custom_call.1} parent=27 // pred_check_branch
          %428 = sbr.rel (%p426) target = $region48
        $region47: #{tpu_custom_call.1} parent=27 // pred_region
          %s429 = sld [smem:[#allocation10 + %s57]]
          %p430 = scmp.lt.s32.totalorder %s58, %s429
          %s431 = scalar_select %p430, %s58, %s429
          %s432 = sld [smem:[#allocation9 + %s57]]
          %p433 = scmp.gt.s32.totalorder %s431, %s432
          %s434 = scalar_select %p433, %s431, %s432
          %s435 = smul.u32 16, %s434
          %p436 = scmp.lt.s32.totalorder %s435, 47
          %s437 = scalar_select %p436, %s435, 47
          %s438 = smul.addr %s437, 4
          %s439 = scalar_lea.vmem %s10, %s438
          %s440 = sld [smem:[#allocation10 + %s57]]
          %p441 = scmp.lt.s32.totalorder %s58, %s440
          %s442 = scalar_select %p441, %s58, %s440
          %s443 = sld [smem:[#allocation9 + %s57]]
          %p444 = scmp.gt.s32.totalorder %s442, %s443
          %s445 = scalar_select %p444, %s442, %s443
          %s446 = smul.u32 16, %s445
        $region48: #{tpu_custom_call.1} parent=27 // pred_fallthru
          _
        // Predicated region
        $region49: #{tpu_custom_call.1} parent=27 // pred_check
          %p447 = pneg %p248
        $region50: #{tpu_custom_call.1} parent=27 // pred_check_branch
          %449 = sbr.rel (%p447) target = $region52
        $region51: #{tpu_custom_call.1} parent=27 // pred_region
          %s450 = smul.u32 8, %s57
          %p451 = scmp.lt.s32.totalorder %s450, 31
          %s452 = scalar_select %p451, %s450, 31
          %s453 = smul.addr %s452, 4
          %s454 = scalar_lea.vmem %s11, %s453
          %s455 = smul.u32 8, %s57
        $region52: #{tpu_custom_call.1} parent=27 // pred_fallthru
          _
      $region28: #{tpu_custom_call.1} parent=5 // pred_fallthru
        _
      %p456 = scmp.le.s32.totalorder 1, %s50
      %p457 = scmp.lt.s32.totalorder %s50, 13
      %p458 = pnand %p456, %p457
      %p459 = pneg %p458
      // Predicated region
      $region53: #{tpu_custom_call.1} parent=5 // pred_check
        _
      $region54: #{tpu_custom_call.1} parent=5 // pred_check_branch
        %461 = sbr.rel (%p458) target = $region56
      $region55: #{tpu_custom_call.1} parent=5 // pred_region
        %s462 = ssub.s32 %s50, 1
        %s463 = smul.u32 8, %s59
        %p464 = scmp.lt.s32.totalorder %s463, 31
        %s465 = scalar_select %p464, %s463, 31
        %s466 = smul.addr %s465, 8
        %s467 = scalar_lea.vmem %s6, %s466
        %p468 = pneg %p88
        %p469 = pneg %p85
        %s470 = sld [smem:[#allocation10 + %s59]]
        %p471 = scmp.lt.s32.totalorder %s60, %s470
        %s472 = scalar_select %p471, %s60, %s470
        %s473 = sld [smem:[#allocation9 + %s59]]
        %p474 = scmp.gt.s32.totalorder %s472, %s473
        %s475 = scalar_select %p474, %s472, %s473
        %p476 = scmp.lt.s32.totalorder %s475, 2
        %s477 = scalar_select %p476, %s475, 2
        %s478 = smul.addr %s477, 8
        %s479 = scalar_lea.vmem %s7, %s478
        %p480 = pneg %p126
        %p481 = pneg %p123
        %s482 = smul.u32 8, %s59
        %p483 = scmp.lt.s32.totalorder %s482, 31
        %s484 = scalar_select %p483, %s482, 31
        %s485 = smul.addr %s484, 8
        %s486 = scalar_lea.vmem %s8, %s485
        %p487 = pneg %p152
        %p488 = pneg %p149
        %s489 = sld [smem:[#allocation10 + %s59]]
        %p490 = scmp.lt.s32.totalorder %s60, %s489
        %s491 = scalar_select %p490, %s60, %s489
        %s492 = sld [smem:[#allocation9 + %s59]]
        %p493 = scmp.gt.s32.totalorder %s491, %s492
        %s494 = scalar_select %p493, %s491, %s492
        %p495 = scmp.lt.s32.totalorder %s494, 2
        %s496 = scalar_select %p495, %s494, 2
        %s497 = scalar_lea.vmem %s9, %s496
        %p498 = pneg %p190
        %p499 = pneg %p187
        %s500 = sld [smem:[#allocation10 + %s59]]
        %p501 = scmp.lt.s32.totalorder %s60, %s500
        %s502 = scalar_select %p501, %s60, %s500
        %s503 = sld [smem:[#allocation9 + %s59]]
        %p504 = scmp.gt.s32.totalorder %s502, %s503
        %s505 = scalar_select %p504, %s502, %s503
        %s506 = smul.u32 16, %s505
        %p507 = scmp.lt.s32.totalorder %s506, 47
        %s508 = scalar_select %p507, %s506, 47
        %s509 = smul.addr %s508, 4
        %s510 = scalar_lea.vmem %s10, %s509
        %p511 = pneg %p228
        %p512 = pneg %p225
        %s513 = smul.u32 8, %s59
        %p514 = scmp.lt.s32.totalorder %s513, 31
        %s515 = scalar_select %p514, %s513, 31
        %s516 = smul.addr %s515, 4
        %s517 = scalar_lea.vmem %s11, %s516
        %p518 = pneg %p254
        %p519 = pneg %p251
        %p520 = pneg %p275
        %p521 = pneg %p272
        %p522 = pneg %p296
        %p523 = pneg %p293
        %p524 = pneg %p317
        %p525 = pneg %p314
        %p526 = pneg %p343
        %p527 = pneg %p340
        %s528 = sand.u32 %s330, 1
        %s529 = scalar_lea.sflag [#allocation12], %s528
        %s530 = sand.u32 %s330, 1
        %s531 = smul.addr %s530, 64
        %s532 = scalar_lea.vmem [#allocation11], %s531
        %s533 = smul.u32 8, %s59
        %p534 = scmp.lt.s32.totalorder %s533, 31
        %s535 = scalar_select %p534, %s533, 31
        %s536 = smul.addr %s535, 8
        %s537 = scalar_lea.vmem %s6, %s536
        %s538 = smul.u32 8, %s59
        %s539 = sld [smem:[#allocation10 + %s59]]
        %p540 = scmp.lt.s32.totalorder %s60, %s539
        %s541 = scalar_select %p540, %s60, %s539
        %s542 = sld [smem:[#allocation9 + %s59]]
        %p543 = scmp.gt.s32.totalorder %s541, %s542
        %s544 = scalar_select %p543, %s541, %s542
        %p545 = scmp.lt.s32.totalorder %s544, 2
        %s546 = scalar_select %p545, %s544, 2
        %s547 = smul.addr %s546, 8
        %s548 = scalar_lea.vmem %s7, %s547
        %s549 = sld [smem:[#allocation10 + %s59]]
        %p550 = scmp.lt.s32.totalorder %s60, %s549
        %s551 = scalar_select %p550, %s60, %s549
        %s552 = sld [smem:[#allocation9 + %s59]]
        %p553 = scmp.gt.s32.totalorder %s551, %s552
        %s554 = scalar_select %p553, %s551, %s552
        %s555 = smul.u32 8, %s59
        %p556 = scmp.lt.s32.totalorder %s555, 31
        %s557 = scalar_select %p556, %s555, 31
        %s558 = smul.addr %s557, 8
        %s559 = scalar_lea.vmem %s8, %s558
        %s560 = smul.u32 8, %s59
        %s561 = sld [smem:[#allocation10 + %s59]]
        %p562 = scmp.lt.s32.totalorder %s60, %s561
        %s563 = scalar_select %p562, %s60, %s561
        %s564 = sld [smem:[#allocation9 + %s59]]
        %p565 = scmp.gt.s32.totalorder %s563, %s564
        %s566 = scalar_select %p565, %s563, %s564
        %p567 = scmp.lt.s32.totalorder %s566, 2
        %s568 = scalar_select %p567, %s566, 2
        %s569 = scalar_lea.vmem %s9, %s568
        %s570 = sld [smem:[#allocation10 + %s59]]
        %p571 = scmp.lt.s32.totalorder %s60, %s570
        %s572 = scalar_select %p571, %s60, %s570
        %s573 = sld [smem:[#allocation9 + %s59]]
        %p574 = scmp.gt.s32.totalorder %s572, %s573
        %s575 = scalar_select %p574, %s572, %s573
        %s576 = sld [smem:[#allocation10 + %s59]]
        %p577 = scmp.lt.s32.totalorder %s60, %s576
        %s578 = scalar_select %p577, %s60, %s576
        %s579 = sld [smem:[#allocation9 + %s59]]
        %p580 = scmp.gt.s32.totalorder %s578, %s579
        %s581 = scalar_select %p580, %s578, %s579
        %s582 = smul.u32 16, %s581
        %p583 = scmp.lt.s32.totalorder %s582, 47
        %s584 = scalar_select %p583, %s582, 47
        %s585 = smul.addr %s584, 4
        %s586 = scalar_lea.vmem %s10, %s585
        %s587 = sld [smem:[#allocation10 + %s59]]
        %p588 = scmp.lt.s32.totalorder %s60, %s587
        %s589 = scalar_select %p588, %s60, %s587
        %s590 = sld [smem:[#allocation9 + %s59]]
        %p591 = scmp.gt.s32.totalorder %s589, %s590
        %s592 = scalar_select %p591, %s589, %s590
        %s593 = smul.u32 16, %s592
        %s594 = smul.u32 8, %s59
        %p595 = scmp.lt.s32.totalorder %s594, 31
        %s596 = scalar_select %p595, %s594, 31
        %s597 = smul.addr %s596, 4
        %s598 = scalar_lea.vmem %s11, %s597
        %s599 = smul.u32 8, %s59
        %s600 = smul.u32 8, %s59
        %p602 = scmp.eq.s32.totalorder %s60, 0
        // Predicated region
        $region57: #{tpu_custom_call.1} parent=55 // pred_check
          %p603 = pneg %p602
        $region58: #{tpu_custom_call.1} parent=55 // pred_check_branch
          %605 = sbr.rel (%p603) target = $region60
        $region59: #{tpu_custom_call.1} parent=55 // pred_region
          %vm606 = vcmask 7168
          %607 = vst.msk [vmem:[#allocation2] sm:$0xff] %vm606, inf
          %608 = vst.msk [vmem:[#allocation2 + $0x8] sm:$0xff] %vm606, inf
          %609 = vst.msk [vmem:[#allocation2 + $0x10] sm:$0xff] %vm606, inf
          %610 = vst.msk [vmem:[#allocation2 + $0x18] sm:$0xff] %vm606, inf
          %611 = vst.msk [vmem:[#allocation2 + $0x20] sm:$0xff] %vm606, inf
          %612 = vst.msk [vmem:[#allocation2 + $0x28] sm:$0xff] %vm606, inf
          %613 = vst.msk [vmem:[#allocation2 + $0x30] sm:$0xff] %vm606, inf
          %614 = vst.msk [vmem:[#allocation2 + $0x38] sm:$0xff] %vm606, inf
          %vm615 = vcmask 130048
          %616 = vst.msk [vmem:[#allocation3] sm:$0xff] %vm615, 0.0
          %617 = vst.msk [vmem:[#allocation3 + $0x8] sm:$0xff] %vm615, 0.0
          %618 = vst.msk [vmem:[#allocation3 + $0x10] sm:$0xff] %vm615, 0.0
          %619 = vst.msk [vmem:[#allocation3 + $0x18] sm:$0xff] %vm615, 0.0
          %620 = vst.msk [vmem:[#allocation3 + $0x20] sm:$0xff] %vm615, 0.0
          %621 = vst.msk [vmem:[#allocation3 + $0x28] sm:$0xff] %vm615, 0.0
          %622 = vst.msk [vmem:[#allocation3 + $0x30] sm:$0xff] %vm615, 0.0
          %623 = vst.msk [vmem:[#allocation3 + $0x38] sm:$0xff] %vm615, 0.0
        $region60: #{tpu_custom_call.1} parent=55 // pred_fallthru
          _
        %s624 = sld [smem:[#allocation9 + %s59]]
        %p625 = scmp.ge.s32.totalorder %s60, %s624
        %s626 = sld [smem:[#allocation10 + %s59]]
        %p627 = scmp.le.s32.totalorder %s60, %s626
        %p628 = pnand %p625, %p627
        %p629 = pneg %p628
        %s630 = sld [smem:[#allocation5 + %s59]]
        %s631 = sld [smem:[#allocation6 + %s59]]
        %p632 = scmp.eq.s32.totalorder %s630, %s631
        %s633 = sld [smem:[#allocation8 + %s60]]
        %p634 = scmp.eq.s32.totalorder %s633, 1
        %p635 = pnand %p632, %p634
        %p636 = pneg %p635
        %s637 = sld [smem:[#allocation7 + %s60]]
        %p638 = scmp.eq.s32.totalorder %s630, %s637
        %p639 = pnand %p636, %p638
        %p640 = pneg %p639
        %p641 = pnand %p629, %p640
        %p642 = pneg %p641
        // Predicated region
        $region61: #{tpu_custom_call.1} parent=55 // pred_check
          _
        $region62: #{tpu_custom_call.1} parent=55 // pred_check_branch
          %644 = sbr.rel (%p641) target = $region64
        $region63: #{tpu_custom_call.1} parent=55 // pred_region
          %v645 = vld [vmem:[%s537] sm:$0xff]
          %v646 = vld [vmem:[%s537 + $0x8] sm:$0xff]
          %v647 = vld [vmem:[%s537 + $0x10] sm:$0xff]
          %v648 = vld [vmem:[%s537 + $0x18] sm:$0xff]
          %v649 = vld [vmem:[%s537 + $0x20] sm:$0xff]
          %v650 = vld [vmem:[%s537 + $0x28] sm:$0xff]
          %v651 = vld [vmem:[%s537 + $0x30] sm:$0xff]
          %v652 = vld [vmem:[%s537 + $0x38] sm:$0xff]
          %v653 = vld [vmem:[%s548] sm:$0xff]
          %vm654 = vcmask 64512
          %v656 = vsel %vm654, %v645, 0
          %v659 = vsel %vm654, %v646, 0
          %v662 = vsel %vm654, %v647, 0
          %v665 = vsel %vm654, %v648, 0
          %v668 = vsel %vm654, %v649, 0
          %v671 = vsel %vm654, %v650, 0
          %v674 = vsel %vm654, %v651, 0
          %v677 = vsel %vm654, %v652, 0
          %679 = vmatprep.subr.mxu0 0.0
          %680 = vmatpush1.msra.mxu0 %v653
          %681 = vmatprep.subr.mxu0 0.0
          %682 = vmatpush1.msra.mxu0 0.0
          %683 = vmatprep.subr.mxu0 0.0
          %684 = vmatpush1.msra.mxu0 0.0
          %685 = vmatprep.subr.mxu0 0.0
          %686 = vmatpush1.msra.mxu0 0.0
          %687 = vmatprep.subr.mxu0 0.0
          %688 = vmatpush1.msra.mxu0 0.0
          %689 = vmatprep.subr.mxu0 0.0
          %690 = vmatpush1.msra.mxu0 0.0
          %691 = vmatprep.subr.mxu0 0.0
          %692 = vmatpush1.msra.mxu0 0.0
          %693 = vmatprep.subr.mxu0 0.0
          %694 = vmatpush1.msra.mxu0 0.0
          %695 = vmatprep.subr.mxu0 0.0
          %696 = vmatpush1.msra.mxu0 0.0
          %697 = vmatprep.subr.mxu0 0.0
          %698 = vmatpush1.msra.mxu0 0.0
          %699 = vmatprep.subr.mxu0 0.0
          %700 = vmatpush1.msra.mxu0 0.0
          %701 = vmatprep.subr.mxu0 0.0
          %702 = vmatpush1.msra.mxu0 0.0
          %703 = vmatprep.subr.mxu0 0.0
          %704 = vmatpush1.msra.mxu0 0.0
          %705 = vmatprep.subr.mxu0 0.0
          %706 = vmatpush1.msra.mxu0 0.0
          %707 = vmatprep.subr.mxu0 0.0
          %708 = vmatpush1.msra.mxu0 0.0
          %709 = vmatprep.subr.mxu0 0.0
          %710 = vmatpush1.msra.mxu0 0.0
          %711 = vmatprep.subr.mxu0 0.0
          %712 = vmatpush1.msra.mxu0 0.0
          %713 = vmatprep.subr.mxu0 0.0
          %714 = vmatpush1.msra.mxu0 0.0
          %715 = vmatprep.subr.mxu0 0.0
          %716 = vmatpush1.msra.mxu0 0.0
          %717 = vmatprep.subr.mxu0 0.0
          %718 = vmatpush1.msra.mxu0 0.0
          %719 = vmatprep.subr.mxu0 0.0
          %720 = vmatpush1.msra.mxu0 0.0
          %721 = vmatprep.subr.mxu0 0.0
          %722 = vmatpush1.msra.mxu0 0.0
          %723 = vmatprep.subr.mxu0 0.0
          %724 = vmatpush1.msra.mxu0 0.0
          %725 = vmatprep.subr.mxu0 0.0
          %726 = vmatpush1.msra.mxu0 0.0
          %727 = vmatprep.subr.mxu0 0.0
          %728 = vmatpush1.msra.mxu0 0.0
          %729 = vmatprep.subr.mxu0 0.0
          %730 = vmatpush1.msra.mxu0 0.0
          %731 = vmatprep.subr.mxu0 0.0
          %732 = vmatpush1.msra.mxu0 0.0
          %733 = vmatprep.subr.mxu0 0.0
          %734 = vmatpush1.msra.mxu0 0.0
          %735 = vmatprep.subr.mxu0 0.0
          %736 = vmatpush1.msra.mxu0 0.0
          %737 = vmatprep.subr.mxu0 0.0
          %738 = vmatpush1.msra.mxu0 0.0
          %739 = vmatprep.subr.mxu0 0.0
          %740 = vmatpush1.msra.mxu0 0.0
          %741 = vmatprep.subr.mxu0 0.0
          %742 = vmatpush1.msra.mxu0 0.0
          %743 = vmatprep.mubr.f32.mxu0 0.0
          %744 = vmatmul.mubr.f32.gmra.mrb[0].mxu0 %v656
          %v745 = vpop.f32.mrb[0].mxu0
          %v746 = vadd.f32 0.0, %v745
          %v747 = vpop.f32.mrb[0].mxu0
          %748 = vmatprep.mubr.f32.mxu0 0.0
          %749 = vmatmul.mubr.f32.gmra.mrb[0].mxu0 %v659
          %v750 = vpop.f32.mrb[0].mxu0
          %v751 = vadd.f32 0.0, %v750
          %v752 = vpop.f32.mrb[0].mxu0
          %753 = vmatprep.mubr.f32.mxu0 0.0
          %754 = vmatmul.mubr.f32.gmra.mrb[0].mxu0 %v662
          %v755 = vpop.f32.mrb[0].mxu0
          %v756 = vadd.f32 0.0, %v755
          %v757 = vpop.f32.mrb[0].mxu0
          %758 = vmatprep.mubr.f32.mxu0 0.0
          %759 = vmatmul.mubr.f32.gmra.mrb[0].mxu0 %v665
          %v760 = vpop.f32.mrb[0].mxu0
          %v761 = vadd.f32 0.0, %v760
          %v762 = vpop.f32.mrb[0].mxu0
          %763 = vmatprep.mubr.f32.mxu0 0.0
          %764 = vmatmul.mubr.f32.gmra.mrb[0].mxu0 %v668
          %v765 = vpop.f32.mrb[0].mxu0
          %v766 = vadd.f32 0.0, %v765
          %v767 = vpop.f32.mrb[0].mxu0
          %768 = vmatprep.mubr.f32.mxu0 0.0
          %769 = vmatmul.mubr.f32.gmra.mrb[0].mxu0 %v671
          %v770 = vpop.f32.mrb[0].mxu0
          %v771 = vadd.f32 0.0, %v770
          %v772 = vpop.f32.mrb[0].mxu0
          %773 = vmatprep.mubr.f32.mxu0 0.0
          %774 = vmatmul.mubr.f32.gmra.mrb[0].mxu0 %v674
          %v775 = vpop.f32.mrb[0].mxu0
          %v776 = vadd.f32 0.0, %v775
          %v777 = vpop.f32.mrb[0].mxu0
          %778 = vmatprep.mubr.f32.mxu0 0.0
          %779 = vmatmul.mubr.f32.gmra.mrb[0].mxu0 %v677
          %v780 = vpop.f32.mrb[0].mxu0
          %v781 = vadd.f32 0.0, %v780
          %v782 = vpop.f32.mrb[0].mxu0
          %783 = vdwg.mxu0
          %784 = vmin.xlane.f32.xlu0 %v746
          %v785 = vpop.xlane.xlu0 %784
          %786 = vmin.xlane.f32.xlu0 %v751
          %v787 = vpop.xlane.xlu0 %786
          %788 = vmin.xlane.f32.xlu0 %v756
          %v789 = vpop.xlane.xlu0 %788
          %790 = vmin.xlane.f32.xlu0 %v761
          %v791 = vpop.xlane.xlu0 %790
          %792 = vmin.xlane.f32.xlu0 %v766
          %v793 = vpop.xlane.xlu0 %792
          %794 = vmin.xlane.f32.xlu0 %v771
          %v795 = vpop.xlane.xlu0 %794
          %796 = vmin.xlane.f32.xlu0 %v776
          %v797 = vpop.xlane.xlu0 %796
          %798 = vmin.xlane.f32.xlu0 %v781
          %v799 = vpop.xlane.xlu0 %798
          %v800 = vlaneseq
          %v801 = vand.u32 %v800, 127
          %vm802 = vcmp.eq.f32.partialorder %v746, %v785
          %vm803 = vcmp.eq.f32.partialorder %v751, %v787
          %vm804 = vcmp.eq.f32.partialorder %v756, %v789
          %vm805 = vcmp.eq.f32.partialorder %v761, %v791
          %vm806 = vcmp.eq.f32.partialorder %v766, %v793
          %vm807 = vcmp.eq.f32.partialorder %v771, %v795
          %vm808 = vcmp.eq.f32.partialorder %v776, %v797
          %vm809 = vcmp.eq.f32.partialorder %v781, %v799
          %v810 = vsel %vm802, %v801, 128
          %v811 = vsel %vm803, %v801, 128
          %v812 = vsel %vm804, %v801, 128
          %v813 = vsel %vm805, %v801, 128
          %v814 = vsel %vm806, %v801, 128
          %v815 = vsel %vm807, %v801, 128
          %v816 = vsel %vm808, %v801, 128
          %v817 = vsel %vm809, %v801, 128
          %v818 = vand.u32 %v810, 65535
          %v819 = vshra.s32 %v810, 16
          %v820 = vcvt.s32.f32 %v818
          %v821 = vcvt.s32.f32 %v819
          %822 = vmin.xlane.f32.xlu0 %v821
          %v823 = vpop.xlane.xlu0 %822
          %vm824 = vcmp.eq.f32.partialorder %v821, %v823
          %v825 = vsel %vm824, %v820, inf
          %826 = vmin.xlane.f32.xlu0 %v825
          %v827 = vpop.xlane.xlu0 %826
          %v828 = vcvt.f32.s32 %v827
          %v829 = vcvt.f32.s32 %v823
          %v830 = vshll.u32 %v829, 16
          %v831 = vadd.s32 %v830, %v828
          %v832 = vand.u32 %v811, 65535
          %v833 = vshra.s32 %v811, 16
          %v834 = vcvt.s32.f32 %v832
          %v835 = vcvt.s32.f32 %v833
          %836 = vmin.xlane.f32.xlu0 %v835
          %v837 = vpop.xlane.xlu0 %836
          %vm838 = vcmp.eq.f32.partialorder %v835, %v837
          %v839 = vsel %vm838, %v834, inf
          %840 = vmin.xlane.f32.xlu0 %v839
          %v841 = vpop.xlane.xlu0 %840
          %v842 = vcvt.f32.s32 %v841
          %v843 = vcvt.f32.s32 %v837
          %v844 = vshll.u32 %v843, 16
          %v845 = vadd.s32 %v844, %v842
          %v846 = vand.u32 %v812, 65535
          %v847 = vshra.s32 %v812, 16
          %v848 = vcvt.s32.f32 %v846
          %v849 = vcvt.s32.f32 %v847
          %850 = vmin.xlane.f32.xlu0 %v849
          %v851 = vpop.xlane.xlu0 %850
          %vm852 = vcmp.eq.f32.partialorder %v849, %v851
          %v853 = vsel %vm852, %v848, inf
          %854 = vmin.xlane.f32.xlu0 %v853
          %v855 = vpop.xlane.xlu0 %854
          %v856 = vcvt.f32.s32 %v855
          %v857 = vcvt.f32.s32 %v851
          %v858 = vshll.u32 %v857, 16
          %v859 = vadd.s32 %v858, %v856
          %v860 = vand.u32 %v813, 65535
          %v861 = vshra.s32 %v813, 16
          %v862 = vcvt.s32.f32 %v860
          %v863 = vcvt.s32.f32 %v861
          %864 = vmin.xlane.f32.xlu0 %v863
          %v865 = vpop.xlane.xlu0 %864
          %vm866 = vcmp.eq.f32.partialorder %v863, %v865
          %v867 = vsel %vm866, %v862, inf
          %868 = vmin.xlane.f32.xlu0 %v867
          %v869 = vpop.xlane.xlu0 %868
          %v870 = vcvt.f32.s32 %v869
          %v871 = vcvt.f32.s32 %v865
          %v872 = vshll.u32 %v871, 16
          %v873 = vadd.s32 %v872, %v870
          %v874 = vand.u32 %v814, 65535
          %v875 = vshra.s32 %v814, 16
          %v876 = vcvt.s32.f32 %v874
          %v877 = vcvt.s32.f32 %v875
          %878 = vmin.xlane.f32.xlu0 %v877
          %v879 = vpop.xlane.xlu0 %878
          %vm880 = vcmp.eq.f32.partialorder %v877, %v879
          %v881 = vsel %vm880, %v876, inf
          %882 = vmin.xlane.f32.xlu0 %v881
          %v883 = vpop.xlane.xlu0 %882
          %v884 = vcvt.f32.s32 %v883
          %v885 = vcvt.f32.s32 %v879
          %v886 = vshll.u32 %v885, 16
          %v887 = vadd.s32 %v886, %v884
          %v888 = vand.u32 %v815, 65535
          %v889 = vshra.s32 %v815, 16
          %v890 = vcvt.s32.f32 %v888
          %v891 = vcvt.s32.f32 %v889
          %892 = vmin.xlane.f32.xlu0 %v891
          %v893 = vpop.xlane.xlu0 %892
          %vm894 = vcmp.eq.f32.partialorder %v891, %v893
          %v895 = vsel %vm894, %v890, inf
          %896 = vmin.xlane.f32.xlu0 %v895
          %v897 = vpop.xlane.xlu0 %896
          %v898 = vcvt.f32.s32 %v897
          %v899 = vcvt.f32.s32 %v893
          %v900 = vshll.u32 %v899, 16
          %v901 = vadd.s32 %v900, %v898
          %v902 = vand.u32 %v816, 65535
          %v903 = vshra.s32 %v816, 16
          %v904 = vcvt.s32.f32 %v902
          %v905 = vcvt.s32.f32 %v903
          %906 = vmin.xlane.f32.xlu0 %v905
          %v907 = vpop.xlane.xlu0 %906
          %vm908 = vcmp.eq.f32.partialorder %v905, %v907
          %v909 = vsel %vm908, %v904, inf
          %910 = vmin.xlane.f32.xlu0 %v909
          %v911 = vpop.xlane.xlu0 %910
          %v912 = vcvt.f32.s32 %v911
          %v913 = vcvt.f32.s32 %v907
          %v914 = vshll.u32 %v913, 16
          %v915 = vadd.s32 %v914, %v912
          %v916 = vand.u32 %v817, 65535
          %v917 = vshra.s32 %v817, 16
          %v918 = vcvt.s32.f32 %v916
          %v919 = vcvt.s32.f32 %v917
          %920 = vmin.xlane.f32.xlu0 %v919
          %v921 = vpop.xlane.xlu0 %920
          %vm922 = vcmp.eq.f32.partialorder %v919, %v921
          %v923 = vsel %vm922, %v918, inf
          %924 = vmin.xlane.f32.xlu0 %v923
          %v925 = vpop.xlane.xlu0 %924
          %v926 = vcvt.f32.s32 %v925
          %v927 = vcvt.f32.s32 %v921
          %v928 = vshll.u32 %v927, 16
          %v929 = vadd.s32 %v928, %v926
          %vm930 = vcmp.eq.s32.totalorder %v801, %v831
          %vm931 = vcmp.eq.s32.totalorder %v801, %v845
          %vm932 = vcmp.eq.s32.totalorder %v801, %v859
          %vm933 = vcmp.eq.s32.totalorder %v801, %v873
          %vm934 = vcmp.eq.s32.totalorder %v801, %v887
          %vm935 = vcmp.eq.s32.totalorder %v801, %v901
          %vm936 = vcmp.eq.s32.totalorder %v801, %v915
          %vm937 = vcmp.eq.s32.totalorder %v801, %v929
          %v938 = vsel %vm930, 1, 0
          %v939 = vsel %vm931, 1, 0
          %v940 = vsel %vm932, 1, 0
          %v941 = vsel %vm933, 1, 0
          %v942 = vsel %vm934, 1, 0
          %v943 = vsel %vm935, 1, 0
          %v944 = vsel %vm936, 1, 0
          %v945 = vsel %vm937, 1, 0
          %v946 = vcvt.s32.f32 %v938
          %v947 = vcvt.s32.f32 %v939
          %v948 = vcvt.s32.f32 %v940
          %v949 = vcvt.s32.f32 %v941
          %v950 = vcvt.s32.f32 %v942
          %v951 = vcvt.s32.f32 %v943
          %v952 = vcvt.s32.f32 %v944
          %v953 = vcvt.s32.f32 %v945
          %v954 = vpack.c.bf16 %v947, %v946
          %v955 = vpack.c.bf16 %v949, %v948
          %v956 = vpack.c.bf16 %v951, %v950
          %v957 = vpack.c.bf16 %v953, %v952
          %v958 = vld [vmem:[%s586] sm:$0xf]
          %v959 = vld [vmem:[%s586 + $0x4] sm:$0xf]
          %v960 = vld [vmem:[%s586 + $0x8] sm:$0xf]
          %v961 = vld [vmem:[%s586 + $0xc] sm:$0xf]
          %v962 = vld [vmem:[%s586 + $0x10] sm:$0xf]
          %v963 = vld [vmem:[%s586 + $0x14] sm:$0xf]
          %v964 = vld [vmem:[%s586 + $0x18] sm:$0xf]
          %v965 = vld [vmem:[%s586 + $0x1c] sm:$0xf]
          %v966 = vld [vmem:[%s586 + $0x20] sm:$0xf]
          %v967 = vld [vmem:[%s586 + $0x24] sm:$0xf]
          %v968 = vld [vmem:[%s586 + $0x28] sm:$0xf]
          %v969 = vld [vmem:[%s586 + $0x2c] sm:$0xf]
          %v970 = vld [vmem:[%s586 + $0x30] sm:$0xf]
          %v971 = vld [vmem:[%s586 + $0x34] sm:$0xf]
          %v972 = vld [vmem:[%s586 + $0x38] sm:$0xf]
          %v973 = vld [vmem:[%s586 + $0x3c] sm:$0xf]
          %v990 = vunpack.c.l.b16 %v958
          %v991 = vunpack.c.l.b16 %v959
          %v992 = vunpack.c.l.b16 %v960
          %v993 = vunpack.c.l.b16 %v961
          %v994 = vunpack.c.l.b16 %v962
          %v995 = vunpack.c.l.b16 %v963
          %v996 = vunpack.c.l.b16 %v964
          %v997 = vunpack.c.l.b16 %v965
          %v998 = vunpack.c.l.b16 %v966
          %v999 = vunpack.c.l.b16 %v967
          %v1000 = vunpack.c.l.b16 %v968
          %v1001 = vunpack.c.l.b16 %v969
          %v1002 = vunpack.c.l.b16 %v970
          %v1003 = vunpack.c.l.b16 %v971
          %v1004 = vunpack.c.l.b16 %v972
          %v1005 = vunpack.c.l.b16 %v973
          %v1006 = vpack.c.b16 %v991, %v990
          %v1007 = vpack.c.b16 %v993, %v992
          %v1008 = vpack.c.b16 %v995, %v994
          %v1009 = vpack.c.b16 %v997, %v996
          %v1010 = vpack.c.b16 %v999, %v998
          %v1011 = vpack.c.b16 %v1001, %v1000
          %v1012 = vpack.c.b16 %v1003, %v1002
          %v1013 = vpack.c.b16 %v1005, %v1004
          %1022 = vmatprep.subr.bf16.mxu0 0
          %1023 = vmatpush1.bf16.msra.mxu0 %v1006
          %1024 = vmatprep.subr.bf16.mxu0 0
          %1025 = vmatpush1.bf16.msra.mxu0 %v1007
          %1026 = vmatprep.subr.bf16.mxu0 0
          %1027 = vmatpush1.bf16.msra.mxu0 %v1008
          %1028 = vmatprep.subr.bf16.mxu0 0
          %1029 = vmatpush1.bf16.msra.mxu0 %v1009
          %1030 = vmatprep.subr.bf16.mxu0 0
          %1031 = vmatpush1.bf16.msra.mxu0 %v1010
          %1032 = vmatprep.subr.bf16.mxu0 0
          %1033 = vmatpush1.bf16.msra.mxu0 %v1011
          %1034 = vmatprep.subr.bf16.mxu0 0
          %1035 = vmatpush1.bf16.msra.mxu0 %v1012
          %1036 = vmatprep.subr.bf16.mxu0 0
          %1037 = vmatpush1.bf16.msra.mxu0 %v1013
          %1038 = vmatprep.subr.bf16.mxu0 0
          %1039 = vmatpush1.bf16.msra.mxu0 0
          %1040 = vmatprep.subr.bf16.mxu0 0
          %1041 = vmatpush1.bf16.msra.mxu0 0
          %1042 = vmatprep.subr.bf16.mxu0 0
          %1043 = vmatpush1.bf16.msra.mxu0 0
          %1044 = vmatprep.subr.bf16.mxu0 0
          %1045 = vmatpush1.bf16.msra.mxu0 0
          %1046 = vmatprep.subr.bf16.mxu0 0
          %1047 = vmatpush1.bf16.msra.mxu0 0
          %1048 = vmatprep.subr.bf16.mxu0 0
          %1049 = vmatpush1.bf16.msra.mxu0 0
          %1050 = vmatprep.subr.bf16.mxu0 0
          %1051 = vmatpush1.bf16.msra.mxu0 0
          %1052 = vmatprep.subr.bf16.mxu0 0
          %1053 = vmatpush1.bf16.msra.mxu0 0
          %1054 = vmatprep.mubr.bf16.mxu0 0
          %1055 = vmatmul.mubr.bf16.gmra.mrb[0].mxu0 %v954
          %v1056 = vpop.f32.mrb[0].mxu0
          %v1057 = vadd.f32 0.0, %v1056
          %v1058 = vpop.f32.mrb[0].mxu0
          %v1059 = vpop.f32.mrb[0].mxu0
          %v1060 = vadd.f32 0.0, %v1059
          %v1061 = vpop.f32.mrb[0].mxu0
          %1062 = vmatprep.mubr.bf16.mxu0 0
          %1063 = vmatmul.mubr.bf16.gmra.mrb[0].mxu0 %v955
          %v1064 = vpop.f32.mrb[0].mxu0
          %v1065 = vadd.f32 0.0, %v1064
          %v1066 = vpop.f32.mrb[0].mxu0
          %v1067 = vpop.f32.mrb[0].mxu0
          %v1068 = vadd.f32 0.0, %v1067
          %v1069 = vpop.f32.mrb[0].mxu0
          %1070 = vmatprep.mubr.bf16.mxu0 0
          %1071 = vmatmul.mubr.bf16.gmra.mrb[0].mxu0 %v956
          %v1072 = vpop.f32.mrb[0].mxu0
          %v1073 = vadd.f32 0.0, %v1072
          %v1074 = vpop.f32.mrb[0].mxu0
          %v1075 = vpop.f32.mrb[0].mxu0
          %v1076 = vadd.f32 0.0, %v1075
          %v1077 = vpop.f32.mrb[0].mxu0
          %1078 = vmatprep.mubr.bf16.mxu0 0
          %1079 = vmatmul.mubr.bf16.gmra.mrb[0].mxu0 %v957
          %v1080 = vpop.f32.mrb[0].mxu0
          %v1081 = vadd.f32 0.0, %v1080
          %v1082 = vpop.f32.mrb[0].mxu0
          %v1083 = vpop.f32.mrb[0].mxu0
          %v1084 = vadd.f32 0.0, %v1083
          %v1085 = vpop.f32.mrb[0].mxu0
          %1086 = vdwg.mxu0
          %v1087 = vld [vmem:[#allocation2] sm:$0xff]
          %v1088 = vld [vmem:[#allocation2 + $0x8] sm:$0xff]
          %v1089 = vld [vmem:[#allocation2 + $0x10] sm:$0xff]
          %v1090 = vld [vmem:[#allocation2 + $0x18] sm:$0xff]
          %v1091 = vld [vmem:[#allocation2 + $0x20] sm:$0xff]
          %v1092 = vld [vmem:[#allocation2 + $0x28] sm:$0xff]
          %v1093 = vld [vmem:[#allocation2 + $0x30] sm:$0xff]
          %v1094 = vld [vmem:[#allocation2 + $0x38] sm:$0xff]
          %vm1095 = vcmp.lt.f32.partialorder %v785, %v1087
          %vm1096 = vcmp.lt.f32.partialorder %v787, %v1088
          %vm1097 = vcmp.lt.f32.partialorder %v789, %v1089
          %vm1098 = vcmp.lt.f32.partialorder %v791, %v1090
          %vm1099 = vcmp.lt.f32.partialorder %v793, %v1091
          %vm1100 = vcmp.lt.f32.partialorder %v795, %v1092
          %vm1101 = vcmp.lt.f32.partialorder %v797, %v1093
          %vm1102 = vcmp.lt.f32.partialorder %v799, %v1094
          %v1103 = vsel %vm1095, %v785, %v1087
          %v1104 = vsel %vm1096, %v787, %v1088
          %v1105 = vsel %vm1097, %v789, %v1089
          %v1106 = vsel %vm1098, %v791, %v1090
          %v1107 = vsel %vm1099, %v793, %v1091
          %v1108 = vsel %vm1100, %v795, %v1092
          %v1109 = vsel %vm1101, %v797, %v1093
          %v1110 = vsel %vm1102, %v799, %v1094
          %vm1111 = vcmask 7168
          %1112 = vst.msk [vmem:[#allocation2] sm:$0xff] %vm1111, %v1103
          %1113 = vst.msk [vmem:[#allocation2 + $0x8] sm:$0xff] %vm1111, %v1104
          %1114 = vst.msk [vmem:[#allocation2 + $0x10] sm:$0xff] %vm1111, %v1105
          %1115 = vst.msk [vmem:[#allocation2 + $0x18] sm:$0xff] %vm1111, %v1106
          %1116 = vst.msk [vmem:[#allocation2 + $0x20] sm:$0xff] %vm1111, %v1107
          %1117 = vst.msk [vmem:[#allocation2 + $0x28] sm:$0xff] %vm1111, %v1108
          %1118 = vst.msk [vmem:[#allocation2 + $0x30] sm:$0xff] %vm1111, %v1109
          %1119 = vst.msk [vmem:[#allocation2 + $0x38] sm:$0xff] %vm1111, %v1110
          %v1120 = vld [vmem:[#allocation3] sm:$0xff]
          %v1121 = vld [vmem:[#allocation3 + $0x8] sm:$0xff]
          %v1122 = vld [vmem:[#allocation3 + $0x10] sm:$0xff]
          %v1123 = vld [vmem:[#allocation3 + $0x18] sm:$0xff]
          %v1124 = vld [vmem:[#allocation3 + $0x20] sm:$0xff]
          %v1125 = vld [vmem:[#allocation3 + $0x28] sm:$0xff]
          %v1126 = vld [vmem:[#allocation3 + $0x30] sm:$0xff]
          %v1127 = vld [vmem:[#allocation3 + $0x38] sm:$0xff]
          %v1128 = vsel %vm1095, 1, 0
          %v1129 = vsel %vm1096, 1, 0
          %v1130 = vsel %vm1097, 1, 0
          %v1131 = vsel %vm1098, 1, 0
          %v1132 = vsel %vm1099, 1, 0
          %v1133 = vsel %vm1100, 1, 0
          %v1134 = vsel %vm1101, 1, 0
          %v1135 = vsel %vm1102, 1, 0
          %1136 = vset.pattern.permute.xlu0 0
          %1137 = vperm.xlu0 %1136, %v1128
          %v1138 = vpop.permute.xlu0 %1137
          %1139 = vset.pattern.permute.xlu0 0
          %1140 = vperm.xlu0 %1139, %v1129
          %v1141 = vpop.permute.xlu0 %1140
          %1142 = vset.pattern.permute.xlu0 0
          %1143 = vperm.xlu0 %1142, %v1130
          %v1144 = vpop.permute.xlu0 %1143
          %1145 = vset.pattern.permute.xlu0 0
          %1146 = vperm.xlu0 %1145, %v1131
          %v1147 = vpop.permute.xlu0 %1146
          %1148 = vset.pattern.permute.xlu0 0
          %1149 = vperm.xlu0 %1148, %v1132
          %v1150 = vpop.permute.xlu0 %1149
          %1151 = vset.pattern.permute.xlu0 0
          %1152 = vperm.xlu0 %1151, %v1133
          %v1153 = vpop.permute.xlu0 %1152
          %1154 = vset.pattern.permute.xlu0 0
          %1155 = vperm.xlu0 %1154, %v1134
          %v1156 = vpop.permute.xlu0 %1155
          %1157 = vset.pattern.permute.xlu0 0
          %1158 = vperm.xlu0 %1157, %v1135
          %v1159 = vpop.permute.xlu0 %1158
          %vm1160 = vcmp.eq.s32.totalorder %v1138, 1
          %vm1161 = vcmp.eq.s32.totalorder %v1141, 1
          %vm1162 = vcmp.eq.s32.totalorder %v1144, 1
          %vm1163 = vcmp.eq.s32.totalorder %v1147, 1
          %vm1164 = vcmp.eq.s32.totalorder %v1150, 1
          %vm1165 = vcmp.eq.s32.totalorder %v1153, 1
          %vm1166 = vcmp.eq.s32.totalorder %v1156, 1
          %vm1167 = vcmp.eq.s32.totalorder %v1159, 1
          %v1168 = vsel %vm1160, %v1057, %v1120
          %v1169 = vsel %vm1161, %v1060, %v1121
          %v1170 = vsel %vm1162, %v1065, %v1122
          %v1171 = vsel %vm1163, %v1068, %v1123
          %v1172 = vsel %vm1164, %v1073, %v1124
          %v1173 = vsel %vm1165, %v1076, %v1125
          %v1174 = vsel %vm1166, %v1081, %v1126
          %v1175 = vsel %vm1167, %v1084, %v1127
          %vm1176 = vcmask 130048
          %1177 = vst.msk [vmem:[#allocation3] sm:$0xff] %vm1176, %v1168
          %1178 = vst.msk [vmem:[#allocation3 + $0x8] sm:$0xff] %vm1176, %v1169
          %1179 = vst.msk [vmem:[#allocation3 + $0x10] sm:$0xff] %vm1176, %v1170
          %1180 = vst.msk [vmem:[#allocation3 + $0x18] sm:$0xff] %vm1176, %v1171
          %1181 = vst.msk [vmem:[#allocation3 + $0x20] sm:$0xff] %vm1176, %v1172
          %1182 = vst.msk [vmem:[#allocation3 + $0x28] sm:$0xff] %vm1176, %v1173
          %1183 = vst.msk [vmem:[#allocation3 + $0x30] sm:$0xff] %vm1176, %v1174
          %1184 = vst.msk [vmem:[#allocation3 + $0x38] sm:$0xff] %vm1176, %v1175
        $region64: #{tpu_custom_call.1} parent=55 // pred_fallthru
          _
        %p1185 = pneg %p640
        %p1186 = pnand %p629, %p1185
        %p1187 = pneg %p1186
        // Predicated region
        $region65: #{tpu_custom_call.1} parent=55 // pred_check
          _
        $region66: #{tpu_custom_call.1} parent=55 // pred_check_branch
          %1189 = sbr.rel (%p1186) target = $region68
        $region67: #{tpu_custom_call.1} parent=55 // pred_region
          %v1190 = vld [vmem:[%s559] sm:$0xff]
          %v1191 = vld [vmem:[%s559 + $0x8] sm:$0xff]
          %v1192 = vld [vmem:[%s559 + $0x10] sm:$0xff]
          %v1193 = vld [vmem:[%s559 + $0x18] sm:$0xff]
          %v1194 = vld [vmem:[%s559 + $0x20] sm:$0xff]
          %v1195 = vld [vmem:[%s559 + $0x28] sm:$0xff]
          %v1196 = vld [vmem:[%s559 + $0x30] sm:$0xff]
          %v1197 = vld [vmem:[%s559 + $0x38] sm:$0xff]
          %v1198 = vld [vmem:[%s569] sm:$0x1]
          %1199 = vset.pattern.permute.xlu0 0
          %1200 = vperm.xlu0 %1199, %v1190
          %v1201 = vpop.permute.xlu0 %1200
          %1202 = vset.pattern.permute.xlu0 0
          %1203 = vperm.xlu0 %1202, %v1191
          %v1204 = vpop.permute.xlu0 %1203
          %1205 = vset.pattern.permute.xlu0 0
          %1206 = vperm.xlu0 %1205, %v1192
          %v1207 = vpop.permute.xlu0 %1206
          %1208 = vset.pattern.permute.xlu0 0
          %1209 = vperm.xlu0 %1208, %v1193
          %v1210 = vpop.permute.xlu0 %1209
          %1211 = vset.pattern.permute.xlu0 0
          %1212 = vperm.xlu0 %1211, %v1194
          %v1213 = vpop.permute.xlu0 %1212
          %1214 = vset.pattern.permute.xlu0 0
          %1215 = vperm.xlu0 %1214, %v1195
          %v1216 = vpop.permute.xlu0 %1215
          %1217 = vset.pattern.permute.xlu0 0
          %1218 = vperm.xlu0 %1217, %v1196
          %v1219 = vpop.permute.xlu0 %1218
          %1220 = vset.pattern.permute.xlu0 0
          %1221 = vperm.xlu0 %1220, %v1197
          %v1222 = vpop.permute.xlu0 %1221
          %v1223 = vlaneseq
          %v1224 = vshrl.u32 %v1223, 7
          %v1225 = vsub.s32 0, %v1224
          %v1226 = vrot.slane %v1198, %v1225
          %vm1227 = vcmp.eq.s32.totalorder %v1201, %v1226
          %vm1228 = vcmp.eq.s32.totalorder %v1204, %v1226
          %vm1229 = vcmp.eq.s32.totalorder %v1207, %v1226
          %vm1230 = vcmp.eq.s32.totalorder %v1210, %v1226
          %vm1231 = vcmp.eq.s32.totalorder %v1213, %v1226
          %vm1232 = vcmp.eq.s32.totalorder %v1216, %v1226
          %vm1233 = vcmp.eq.s32.totalorder %v1219, %v1226
          %vm1234 = vcmp.eq.s32.totalorder %v1222, %v1226
          %v1235 = vld [vmem:[%s537] sm:$0xff]
          %v1236 = vld [vmem:[%s537 + $0x8] sm:$0xff]
          %v1237 = vld [vmem:[%s537 + $0x10] sm:$0xff]
          %v1238 = vld [vmem:[%s537 + $0x18] sm:$0xff]
          %v1239 = vld [vmem:[%s537 + $0x20] sm:$0xff]
          %v1240 = vld [vmem:[%s537 + $0x28] sm:$0xff]
          %v1241 = vld [vmem:[%s537 + $0x30] sm:$0xff]
          %v1242 = vld [vmem:[%s537 + $0x38] sm:$0xff]
          %v1243 = vld [vmem:[%s548] sm:$0xff]
          %vm1244 = vcmask 64512
          %v1246 = vsel %vm1244, %v1235, 0
          %v1249 = vsel %vm1244, %v1236, 0
          %v1252 = vsel %vm1244, %v1237, 0
          %v1255 = vsel %vm1244, %v1238, 0
          %v1258 = vsel %vm1244, %v1239, 0
          %v1261 = vsel %vm1244, %v1240, 0
          %v1264 = vsel %vm1244, %v1241, 0
          %v1267 = vsel %vm1244, %v1242, 0
          %1269 = vmatprep.subr.mxu0 0.0
          %1270 = vmatpush1.msra.mxu0 %v1243
          %1271 = vmatprep.subr.mxu0 0.0
          %1272 = vmatpush1.msra.mxu0 0.0
          %1273 = vmatprep.subr.mxu0 0.0
          %1274 = vmatpush1.msra.mxu0 0.0
          %1275 = vmatprep.subr.mxu0 0.0
          %1276 = vmatpush1.msra.mxu0 0.0
          %1277 = vmatprep.subr.mxu0 0.0
          %1278 = vmatpush1.msra.mxu0 0.0
          %1279 = vmatprep.subr.mxu0 0.0
          %1280 = vmatpush1.msra.mxu0 0.0
          %1281 = vmatprep.subr.mxu0 0.0
          %1282 = vmatpush1.msra.mxu0 0.0
          %1283 = vmatprep.subr.mxu0 0.0
          %1284 = vmatpush1.msra.mxu0 0.0
          %1285 = vmatprep.subr.mxu0 0.0
          %1286 = vmatpush1.msra.mxu0 0.0
          %1287 = vmatprep.subr.mxu0 0.0
          %1288 = vmatpush1.msra.mxu0 0.0
          %1289 = vmatprep.subr.mxu0 0.0
          %1290 = vmatpush1.msra.mxu0 0.0
          %1291 = vmatprep.subr.mxu0 0.0
          %1292 = vmatpush1.msra.mxu0 0.0
          %1293 = vmatprep.subr.mxu0 0.0
          %1294 = vmatpush1.msra.mxu0 0.0
          %1295 = vmatprep.subr.mxu0 0.0
          %1296 = vmatpush1.msra.mxu0 0.0
          %1297 = vmatprep.subr.mxu0 0.0
          %1298 = vmatpush1.msra.mxu0 0.0
          %1299 = vmatprep.subr.mxu0 0.0
          %1300 = vmatpush1.msra.mxu0 0.0
          %1301 = vmatprep.subr.mxu0 0.0
          %1302 = vmatpush1.msra.mxu0 0.0
          %1303 = vmatprep.subr.mxu0 0.0
          %1304 = vmatpush1.msra.mxu0 0.0
          %1305 = vmatprep.subr.mxu0 0.0
          %1306 = vmatpush1.msra.mxu0 0.0
          %1307 = vmatprep.subr.mxu0 0.0
          %1308 = vmatpush1.msra.mxu0 0.0
          %1309 = vmatprep.subr.mxu0 0.0
          %1310 = vmatpush1.msra.mxu0 0.0
          %1311 = vmatprep.subr.mxu0 0.0
          %1312 = vmatpush1.msra.mxu0 0.0
          %1313 = vmatprep.subr.mxu0 0.0
          %1314 = vmatpush1.msra.mxu0 0.0
          %1315 = vmatprep.subr.mxu0 0.0
          %1316 = vmatpush1.msra.mxu0 0.0
          %1317 = vmatprep.subr.mxu0 0.0
          %1318 = vmatpush1.msra.mxu0 0.0
          %1319 = vmatprep.subr.mxu0 0.0
          %1320 = vmatpush1.msra.mxu0 0.0
          %1321 = vmatprep.subr.mxu0 0.0
          %1322 = vmatpush1.msra.mxu0 0.0
          %1323 = vmatprep.subr.mxu0 0.0
          %1324 = vmatpush1.msra.mxu0 0.0
          %1325 = vmatprep.subr.mxu0 0.0
          %1326 = vmatpush1.msra.mxu0 0.0
          %1327 = vmatprep.subr.mxu0 0.0
          %1328 = vmatpush1.msra.mxu0 0.0
          %1329 = vmatprep.subr.mxu0 0.0
          %1330 = vmatpush1.msra.mxu0 0.0
          %1331 = vmatprep.subr.mxu0 0.0
          %1332 = vmatpush1.msra.mxu0 0.0
          %1333 = vmatprep.mubr.f32.mxu0 0.0
          %1334 = vmatmul.mubr.f32.gmra.mrb[0].mxu0 %v1246
          %v1335 = vpop.f32.mrb[0].mxu0
          %v1336 = vadd.f32 0.0, %v1335
          %v1337 = vpop.f32.mrb[0].mxu0
          %1338 = vmatprep.mubr.f32.mxu0 0.0
          %1339 = vmatmul.mubr.f32.gmra.mrb[0].mxu0 %v1249
          %v1340 = vpop.f32.mrb[0].mxu0
          %v1341 = vadd.f32 0.0, %v1340
          %v1342 = vpop.f32.mrb[0].mxu0
          %1343 = vmatprep.mubr.f32.mxu0 0.0
          %1344 = vmatmul.mubr.f32.gmra.mrb[0].mxu0 %v1252
          %v1345 = vpop.f32.mrb[0].mxu0
          %v1346 = vadd.f32 0.0, %v1345
          %v1347 = vpop.f32.mrb[0].mxu0
          %1348 = vmatprep.mubr.f32.mxu0 0.0
          %1349 = vmatmul.mubr.f32.gmra.mrb[0].mxu0 %v1255
          %v1350 = vpop.f32.mrb[0].mxu0
          %v1351 = vadd.f32 0.0, %v1350
          %v1352 = vpop.f32.mrb[0].mxu0
          %1353 = vmatprep.mubr.f32.mxu0 0.0
          %1354 = vmatmul.mubr.f32.gmra.mrb[0].mxu0 %v1258
          %v1355 = vpop.f32.mrb[0].mxu0
          %v1356 = vadd.f32 0.0, %v1355
          %v1357 = vpop.f32.mrb[0].mxu0
          %1358 = vmatprep.mubr.f32.mxu0 0.0
          %1359 = vmatmul.mubr.f32.gmra.mrb[0].mxu0 %v1261
          %v1360 = vpop.f32.mrb[0].mxu0
          %v1361 = vadd.f32 0.0, %v1360
          %v1362 = vpop.f32.mrb[0].mxu0
          %1363 = vmatprep.mubr.f32.mxu0 0.0
          %1364 = vmatmul.mubr.f32.gmra.mrb[0].mxu0 %v1264
          %v1365 = vpop.f32.mrb[0].mxu0
          %v1366 = vadd.f32 0.0, %v1365
          %v1367 = vpop.f32.mrb[0].mxu0
          %1368 = vmatprep.mubr.f32.mxu0 0.0
          %1369 = vmatmul.mubr.f32.gmra.mrb[0].mxu0 %v1267
          %v1370 = vpop.f32.mrb[0].mxu0
          %v1371 = vadd.f32 0.0, %v1370
          %v1372 = vpop.f32.mrb[0].mxu0
          %1373 = vdwg.mxu0
          %v1374 = vsel %vm1227, %v1336, inf
          %v1375 = vsel %vm1228, %v1341, inf
          %v1376 = vsel %vm1229, %v1346, inf
          %v1377 = vsel %vm1230, %v1351, inf
          %v1378 = vsel %vm1231, %v1356, inf
          %v1379 = vsel %vm1232, %v1361, inf
          %v1380 = vsel %vm1233, %v1366, inf
          %v1381 = vsel %vm1234, %v1371, inf
          %1382 = vmin.xlane.f32.xlu0 %v1374
          %v1383 = vpop.xlane.xlu0 %1382
          %1384 = vmin.xlane.f32.xlu0 %v1375
          %v1385 = vpop.xlane.xlu0 %1384
          %1386 = vmin.xlane.f32.xlu0 %v1376
          %v1387 = vpop.xlane.xlu0 %1386
          %1388 = vmin.xlane.f32.xlu0 %v1377
          %v1389 = vpop.xlane.xlu0 %1388
          %1390 = vmin.xlane.f32.xlu0 %v1378
          %v1391 = vpop.xlane.xlu0 %1390
          %1392 = vmin.xlane.f32.xlu0 %v1379
          %v1393 = vpop.xlane.xlu0 %1392
          %1394 = vmin.xlane.f32.xlu0 %v1380
          %v1395 = vpop.xlane.xlu0 %1394
          %1396 = vmin.xlane.f32.xlu0 %v1381
          %v1397 = vpop.xlane.xlu0 %1396
          %v1398 = vlaneseq
          %v1399 = vand.u32 %v1398, 127
          %vm1400 = vcmp.eq.f32.partialorder %v1374, %v1383
          %vm1401 = vcmp.eq.f32.partialorder %v1375, %v1385
          %vm1402 = vcmp.eq.f32.partialorder %v1376, %v1387
          %vm1403 = vcmp.eq.f32.partialorder %v1377, %v1389
          %vm1404 = vcmp.eq.f32.partialorder %v1378, %v1391
          %vm1405 = vcmp.eq.f32.partialorder %v1379, %v1393
          %vm1406 = vcmp.eq.f32.partialorder %v1380, %v1395
          %vm1407 = vcmp.eq.f32.partialorder %v1381, %v1397
          %v1408 = vsel %vm1400, %v1399, 128
          %v1409 = vsel %vm1401, %v1399, 128
          %v1410 = vsel %vm1402, %v1399, 128
          %v1411 = vsel %vm1403, %v1399, 128
          %v1412 = vsel %vm1404, %v1399, 128
          %v1413 = vsel %vm1405, %v1399, 128
          %v1414 = vsel %vm1406, %v1399, 128
          %v1415 = vsel %vm1407, %v1399, 128
          %v1416 = vand.u32 %v1408, 65535
          %v1417 = vshra.s32 %v1408, 16
          %v1418 = vcvt.s32.f32 %v1416
          %v1419 = vcvt.s32.f32 %v1417
          %1420 = vmin.xlane.f32.xlu0 %v1419
          %v1421 = vpop.xlane.xlu0 %1420
          %vm1422 = vcmp.eq.f32.partialorder %v1419, %v1421
          %v1423 = vsel %vm1422, %v1418, inf
          %1424 = vmin.xlane.f32.xlu0 %v1423
          %v1425 = vpop.xlane.xlu0 %1424
          %v1426 = vcvt.f32.s32 %v1425
          %v1427 = vcvt.f32.s32 %v1421
          %v1428 = vshll.u32 %v1427, 16
          %v1429 = vadd.s32 %v1428, %v1426
          %v1430 = vand.u32 %v1409, 65535
          %v1431 = vshra.s32 %v1409, 16
          %v1432 = vcvt.s32.f32 %v1430
          %v1433 = vcvt.s32.f32 %v1431
          %1434 = vmin.xlane.f32.xlu0 %v1433
          %v1435 = vpop.xlane.xlu0 %1434
          %vm1436 = vcmp.eq.f32.partialorder %v1433, %v1435
          %v1437 = vsel %vm1436, %v1432, inf
          %1438 = vmin.xlane.f32.xlu0 %v1437
          %v1439 = vpop.xlane.xlu0 %1438
          %v1440 = vcvt.f32.s32 %v1439
          %v1441 = vcvt.f32.s32 %v1435
          %v1442 = vshll.u32 %v1441, 16
          %v1443 = vadd.s32 %v1442, %v1440
          %v1444 = vand.u32 %v1410, 65535
          %v1445 = vshra.s32 %v1410, 16
          %v1446 = vcvt.s32.f32 %v1444
          %v1447 = vcvt.s32.f32 %v1445
          %1448 = vmin.xlane.f32.xlu0 %v1447
          %v1449 = vpop.xlane.xlu0 %1448
          %vm1450 = vcmp.eq.f32.partialorder %v1447, %v1449
          %v1451 = vsel %vm1450, %v1446, inf
          %1452 = vmin.xlane.f32.xlu0 %v1451
          %v1453 = vpop.xlane.xlu0 %1452
          %v1454 = vcvt.f32.s32 %v1453
          %v1455 = vcvt.f32.s32 %v1449
          %v1456 = vshll.u32 %v1455, 16
          %v1457 = vadd.s32 %v1456, %v1454
          %v1458 = vand.u32 %v1411, 65535
          %v1459 = vshra.s32 %v1411, 16
          %v1460 = vcvt.s32.f32 %v1458
          %v1461 = vcvt.s32.f32 %v1459
          %1462 = vmin.xlane.f32.xlu0 %v1461
          %v1463 = vpop.xlane.xlu0 %1462
          %vm1464 = vcmp.eq.f32.partialorder %v1461, %v1463
          %v1465 = vsel %vm1464, %v1460, inf
          %1466 = vmin.xlane.f32.xlu0 %v1465
          %v1467 = vpop.xlane.xlu0 %1466
          %v1468 = vcvt.f32.s32 %v1467
          %v1469 = vcvt.f32.s32 %v1463
          %v1470 = vshll.u32 %v1469, 16
          %v1471 = vadd.s32 %v1470, %v1468
          %v1472 = vand.u32 %v1412, 65535
          %v1473 = vshra.s32 %v1412, 16
          %v1474 = vcvt.s32.f32 %v1472
          %v1475 = vcvt.s32.f32 %v1473
          %1476 = vmin.xlane.f32.xlu0 %v1475
          %v1477 = vpop.xlane.xlu0 %1476
          %vm1478 = vcmp.eq.f32.partialorder %v1475, %v1477
          %v1479 = vsel %vm1478, %v1474, inf
          %1480 = vmin.xlane.f32.xlu0 %v1479
          %v1481 = vpop.xlane.xlu0 %1480
          %v1482 = vcvt.f32.s32 %v1481
          %v1483 = vcvt.f32.s32 %v1477
          %v1484 = vshll.u32 %v1483, 16
          %v1485 = vadd.s32 %v1484, %v1482
          %v1486 = vand.u32 %v1413, 65535
          %v1487 = vshra.s32 %v1413, 16
          %v1488 = vcvt.s32.f32 %v1486
          %v1489 = vcvt.s32.f32 %v1487
          %1490 = vmin.xlane.f32.xlu0 %v1489
          %v1491 = vpop.xlane.xlu0 %1490
          %vm1492 = vcmp.eq.f32.partialorder %v1489, %v1491
          %v1493 = vsel %vm1492, %v1488, inf
          %1494 = vmin.xlane.f32.xlu0 %v1493
          %v1495 = vpop.xlane.xlu0 %1494
          %v1496 = vcvt.f32.s32 %v1495
          %v1497 = vcvt.f32.s32 %v1491
          %v1498 = vshll.u32 %v1497, 16
          %v1499 = vadd.s32 %v1498, %v1496
          %v1500 = vand.u32 %v1414, 65535
          %v1501 = vshra.s32 %v1414, 16
          %v1502 = vcvt.s32.f32 %v1500
          %v1503 = vcvt.s32.f32 %v1501
          %1504 = vmin.xlane.f32.xlu0 %v1503
          %v1505 = vpop.xlane.xlu0 %1504
          %vm1506 = vcmp.eq.f32.partialorder %v1503, %v1505
          %v1507 = vsel %vm1506, %v1502, inf
          %1508 = vmin.xlane.f32.xlu0 %v1507
          %v1509 = vpop.xlane.xlu0 %1508
          %v1510 = vcvt.f32.s32 %v1509
          %v1511 = vcvt.f32.s32 %v1505
          %v1512 = vshll.u32 %v1511, 16
          %v1513 = vadd.s32 %v1512, %v1510
          %v1514 = vand.u32 %v1415, 65535
          %v1515 = vshra.s32 %v1415, 16
          %v1516 = vcvt.s32.f32 %v1514
          %v1517 = vcvt.s32.f32 %v1515
          %1518 = vmin.xlane.f32.xlu0 %v1517
          %v1519 = vpop.xlane.xlu0 %1518
          %vm1520 = vcmp.eq.f32.partialorder %v1517, %v1519
          %v1521 = vsel %vm1520, %v1516, inf
          %1522 = vmin.xlane.f32.xlu0 %v1521
          %v1523 = vpop.xlane.xlu0 %1522
          %v1524 = vcvt.f32.s32 %v1523
          %v1525 = vcvt.f32.s32 %v1519
          %v1526 = vshll.u32 %v1525, 16
          %v1527 = vadd.s32 %v1526, %v1524
          %vm1528 = vcmp.eq.s32.totalorder %v1399, %v1429
          %vm1529 = vcmp.eq.s32.totalorder %v1399, %v1443
          %vm1530 = vcmp.eq.s32.totalorder %v1399, %v1457
          %vm1531 = vcmp.eq.s32.totalorder %v1399, %v1471
          %vm1532 = vcmp.eq.s32.totalorder %v1399, %v1485
          %vm1533 = vcmp.eq.s32.totalorder %v1399, %v1499
          %vm1534 = vcmp.eq.s32.totalorder %v1399, %v1513
          %vm1535 = vcmp.eq.s32.totalorder %v1399, %v1527
          %v1536 = vsel %vm1528, 1, 0
          %v1537 = vsel %vm1529, 1, 0
          %v1538 = vsel %vm1530, 1, 0
          %v1539 = vsel %vm1531, 1, 0
          %v1540 = vsel %vm1532, 1, 0
          %v1541 = vsel %vm1533, 1, 0
          %v1542 = vsel %vm1534, 1, 0
          %v1543 = vsel %vm1535, 1, 0
          %v1544 = vcvt.s32.f32 %v1536
          %v1545 = vcvt.s32.f32 %v1537
          %v1546 = vcvt.s32.f32 %v1538
          %v1547 = vcvt.s32.f32 %v1539
          %v1548 = vcvt.s32.f32 %v1540
          %v1549 = vcvt.s32.f32 %v1541
          %v1550 = vcvt.s32.f32 %v1542
          %v1551 = vcvt.s32.f32 %v1543
          %v1552 = vpack.c.bf16 %v1545, %v1544
          %v1553 = vpack.c.bf16 %v1547, %v1546
          %v1554 = vpack.c.bf16 %v1549, %v1548
          %v1555 = vpack.c.bf16 %v1551, %v1550
          %v1556 = vld [vmem:[%s586] sm:$0xf]
          %v1557 = vld [vmem:[%s586 + $0x4] sm:$0xf]
          %v1558 = vld [vmem:[%s586 + $0x8] sm:$0xf]
          %v1559 = vld [vmem:[%s586 + $0xc] sm:$0xf]
          %v1560 = vld [vmem:[%s586 + $0x10] sm:$0xf]
          %v1561 = vld [vmem:[%s586 + $0x14] sm:$0xf]
          %v1562 = vld [vmem:[%s586 + $0x18] sm:$0xf]
          %v1563 = vld [vmem:[%s586 + $0x1c] sm:$0xf]
          %v1564 = vld [vmem:[%s586 + $0x20] sm:$0xf]
          %v1565 = vld [vmem:[%s586 + $0x24] sm:$0xf]
          %v1566 = vld [vmem:[%s586 + $0x28] sm:$0xf]
          %v1567 = vld [vmem:[%s586 + $0x2c] sm:$0xf]
          %v1568 = vld [vmem:[%s586 + $0x30] sm:$0xf]
          %v1569 = vld [vmem:[%s586 + $0x34] sm:$0xf]
          %v1570 = vld [vmem:[%s586 + $0x38] sm:$0xf]
          %v1571 = vld [vmem:[%s586 + $0x3c] sm:$0xf]
          %v1588 = vunpack.c.l.b16 %v1556
          %v1589 = vunpack.c.l.b16 %v1557
          %v1590 = vunpack.c.l.b16 %v1558
          %v1591 = vunpack.c.l.b16 %v1559
          %v1592 = vunpack.c.l.b16 %v1560
          %v1593 = vunpack.c.l.b16 %v1561
          %v1594 = vunpack.c.l.b16 %v1562
          %v1595 = vunpack.c.l.b16 %v1563
          %v1596 = vunpack.c.l.b16 %v1564
          %v1597 = vunpack.c.l.b16 %v1565
          %v1598 = vunpack.c.l.b16 %v1566
          %v1599 = vunpack.c.l.b16 %v1567
          %v1600 = vunpack.c.l.b16 %v1568
          %v1601 = vunpack.c.l.b16 %v1569
          %v1602 = vunpack.c.l.b16 %v1570
          %v1603 = vunpack.c.l.b16 %v1571
          %v1604 = vpack.c.b16 %v1589, %v1588
          %v1605 = vpack.c.b16 %v1591, %v1590
          %v1606 = vpack.c.b16 %v1593, %v1592
          %v1607 = vpack.c.b16 %v1595, %v1594
          %v1608 = vpack.c.b16 %v1597, %v1596
          %v1609 = vpack.c.b16 %v1599, %v1598
          %v1610 = vpack.c.b16 %v1601, %v1600
          %v1611 = vpack.c.b16 %v1603, %v1602
          %1620 = vmatprep.subr.bf16.mxu0 0
          %1621 = vmatpush1.bf16.msra.mxu0 %v1604
          %1622 = vmatprep.subr.bf16.mxu0 0
          %1623 = vmatpush1.bf16.msra.mxu0 %v1605
          %1624 = vmatprep.subr.bf16.mxu0 0
          %1625 = vmatpush1.bf16.msra.mxu0 %v1606
          %1626 = vmatprep.subr.bf16.mxu0 0
          %1627 = vmatpush1.bf16.msra.mxu0 %v1607
          %1628 = vmatprep.subr.bf16.mxu0 0
          %1629 = vmatpush1.bf16.msra.mxu0 %v1608
          %1630 = vmatprep.subr.bf16.mxu0 0
          %1631 = vmatpush1.bf16.msra.mxu0 %v1609
          %1632 = vmatprep.subr.bf16.mxu0 0
          %1633 = vmatpush1.bf16.msra.mxu0 %v1610
          %1634 = vmatprep.subr.bf16.mxu0 0
          %1635 = vmatpush1.bf16.msra.mxu0 %v1611
          %1636 = vmatprep.subr.bf16.mxu0 0
          %1637 = vmatpush1.bf16.msra.mxu0 0
          %1638 = vmatprep.subr.bf16.mxu0 0
          %1639 = vmatpush1.bf16.msra.mxu0 0
          %1640 = vmatprep.subr.bf16.mxu0 0
          %1641 = vmatpush1.bf16.msra.mxu0 0
          %1642 = vmatprep.subr.bf16.mxu0 0
          %1643 = vmatpush1.bf16.msra.mxu0 0
          %1644 = vmatprep.subr.bf16.mxu0 0
          %1645 = vmatpush1.bf16.msra.mxu0 0
          %1646 = vmatprep.subr.bf16.mxu0 0
          %1647 = vmatpush1.bf16.msra.mxu0 0
          %1648 = vmatprep.subr.bf16.mxu0 0
          %1649 = vmatpush1.bf16.msra.mxu0 0
          %1650 = vmatprep.subr.bf16.mxu0 0
          %1651 = vmatpush1.bf16.msra.mxu0 0
          %1652 = vmatprep.mubr.bf16.mxu0 0
          %1653 = vmatmul.mubr.bf16.gmra.mrb[0].mxu0 %v1552
          %v1654 = vpop.f32.mrb[0].mxu0
          %v1655 = vadd.f32 0.0, %v1654
          %v1656 = vpop.f32.mrb[0].mxu0
          %v1657 = vpop.f32.mrb[0].mxu0
          %v1658 = vadd.f32 0.0, %v1657
          %v1659 = vpop.f32.mrb[0].mxu0
          %1660 = vmatprep.mubr.bf16.mxu0 0
          %1661 = vmatmul.mubr.bf16.gmra.mrb[0].mxu0 %v1553
          %v1662 = vpop.f32.mrb[0].mxu0
          %v1663 = vadd.f32 0.0, %v1662
          %v1664 = vpop.f32.mrb[0].mxu0
          %v1665 = vpop.f32.mrb[0].mxu0
          %v1666 = vadd.f32 0.0, %v1665
          %v1667 = vpop.f32.mrb[0].mxu0
          %1668 = vmatprep.mubr.bf16.mxu0 0
          %1669 = vmatmul.mubr.bf16.gmra.mrb[0].mxu0 %v1554
          %v1670 = vpop.f32.mrb[0].mxu0
          %v1671 = vadd.f32 0.0, %v1670
          %v1672 = vpop.f32.mrb[0].mxu0
          %v1673 = vpop.f32.mrb[0].mxu0
          %v1674 = vadd.f32 0.0, %v1673
          %v1675 = vpop.f32.mrb[0].mxu0
          %1676 = vmatprep.mubr.bf16.mxu0 0
          %1677 = vmatmul.mubr.bf16.gmra.mrb[0].mxu0 %v1555
          %v1678 = vpop.f32.mrb[0].mxu0
          %v1679 = vadd.f32 0.0, %v1678
          %v1680 = vpop.f32.mrb[0].mxu0
          %v1681 = vpop.f32.mrb[0].mxu0
          %v1682 = vadd.f32 0.0, %v1681
          %v1683 = vpop.f32.mrb[0].mxu0
          %1684 = vdwg.mxu0
          %v1685 = vld [vmem:[#allocation2] sm:$0xff]
          %v1686 = vld [vmem:[#allocation2 + $0x8] sm:$0xff]
          %v1687 = vld [vmem:[#allocation2 + $0x10] sm:$0xff]
          %v1688 = vld [vmem:[#allocation2 + $0x18] sm:$0xff]
          %v1689 = vld [vmem:[#allocation2 + $0x20] sm:$0xff]
          %v1690 = vld [vmem:[#allocation2 + $0x28] sm:$0xff]
          %v1691 = vld [vmem:[#allocation2 + $0x30] sm:$0xff]
          %v1692 = vld [vmem:[#allocation2 + $0x38] sm:$0xff]
          %vm1693 = vcmp.lt.f32.partialorder %v1383, %v1685
          %vm1694 = vcmp.lt.f32.partialorder %v1385, %v1686
          %vm1695 = vcmp.lt.f32.partialorder %v1387, %v1687
          %vm1696 = vcmp.lt.f32.partialorder %v1389, %v1688
          %vm1697 = vcmp.lt.f32.partialorder %v1391, %v1689
          %vm1698 = vcmp.lt.f32.partialorder %v1393, %v1690
          %vm1699 = vcmp.lt.f32.partialorder %v1395, %v1691
          %vm1700 = vcmp.lt.f32.partialorder %v1397, %v1692
          %v1701 = vsel %vm1693, %v1383, %v1685
          %v1702 = vsel %vm1694, %v1385, %v1686
          %v1703 = vsel %vm1695, %v1387, %v1687
          %v1704 = vsel %vm1696, %v1389, %v1688
          %v1705 = vsel %vm1697, %v1391, %v1689
          %v1706 = vsel %vm1698, %v1393, %v1690
          %v1707 = vsel %vm1699, %v1395, %v1691
          %v1708 = vsel %vm1700, %v1397, %v1692
          %vm1709 = vcmask 7168
          %1710 = vst.msk [vmem:[#allocation2] sm:$0xff] %vm1709, %v1701
          %1711 = vst.msk [vmem:[#allocation2 + $0x8] sm:$0xff] %vm1709, %v1702
          %1712 = vst.msk [vmem:[#allocation2 + $0x10] sm:$0xff] %vm1709, %v1703
          %1713 = vst.msk [vmem:[#allocation2 + $0x18] sm:$0xff] %vm1709, %v1704
          %1714 = vst.msk [vmem:[#allocation2 + $0x20] sm:$0xff] %vm1709, %v1705
          %1715 = vst.msk [vmem:[#allocation2 + $0x28] sm:$0xff] %vm1709, %v1706
          %1716 = vst.msk [vmem:[#allocation2 + $0x30] sm:$0xff] %vm1709, %v1707
          %1717 = vst.msk [vmem:[#allocation2 + $0x38] sm:$0xff] %vm1709, %v1708
          %v1718 = vld [vmem:[#allocation3] sm:$0xff]
          %v1719 = vld [vmem:[#allocation3 + $0x8] sm:$0xff]
          %v1720 = vld [vmem:[#allocation3 + $0x10] sm:$0xff]
          %v1721 = vld [vmem:[#allocation3 + $0x18] sm:$0xff]
          %v1722 = vld [vmem:[#allocation3 + $0x20] sm:$0xff]
          %v1723 = vld [vmem:[#allocation3 + $0x28] sm:$0xff]
          %v1724 = vld [vmem:[#allocation3 + $0x30] sm:$0xff]
          %v1725 = vld [vmem:[#allocation3 + $0x38] sm:$0xff]
          %v1726 = vsel %vm1693, 1, 0
          %v1727 = vsel %vm1694, 1, 0
          %v1728 = vsel %vm1695, 1, 0
          %v1729 = vsel %vm1696, 1, 0
          %v1730 = vsel %vm1697, 1, 0
          %v1731 = vsel %vm1698, 1, 0
          %v1732 = vsel %vm1699, 1, 0
          %v1733 = vsel %vm1700, 1, 0
          %1734 = vset.pattern.permute.xlu0 0
          %1735 = vperm.xlu0 %1734, %v1726
          %v1736 = vpop.permute.xlu0 %1735
          %1737 = vset.pattern.permute.xlu0 0
          %1738 = vperm.xlu0 %1737, %v1727
          %v1739 = vpop.permute.xlu0 %1738
          %1740 = vset.pattern.permute.xlu0 0
          %1741 = vperm.xlu0 %1740, %v1728
          %v1742 = vpop.permute.xlu0 %1741
          %1743 = vset.pattern.permute.xlu0 0
          %1744 = vperm.xlu0 %1743, %v1729
          %v1745 = vpop.permute.xlu0 %1744
          %1746 = vset.pattern.permute.xlu0 0
          %1747 = vperm.xlu0 %1746, %v1730
          %v1748 = vpop.permute.xlu0 %1747
          %1749 = vset.pattern.permute.xlu0 0
          %1750 = vperm.xlu0 %1749, %v1731
          %v1751 = vpop.permute.xlu0 %1750
          %1752 = vset.pattern.permute.xlu0 0
          %1753 = vperm.xlu0 %1752, %v1732
          %v1754 = vpop.permute.xlu0 %1753
          %1755 = vset.pattern.permute.xlu0 0
          %1756 = vperm.xlu0 %1755, %v1733
          %v1757 = vpop.permute.xlu0 %1756
          %vm1758 = vcmp.eq.s32.totalorder %v1736, 1
          %vm1759 = vcmp.eq.s32.totalorder %v1739, 1
          %vm1760 = vcmp.eq.s32.totalorder %v1742, 1
          %vm1761 = vcmp.eq.s32.totalorder %v1745, 1
          %vm1762 = vcmp.eq.s32.totalorder %v1748, 1
          %vm1763 = vcmp.eq.s32.totalorder %v1751, 1
          %vm1764 = vcmp.eq.s32.totalorder %v1754, 1
          %vm1765 = vcmp.eq.s32.totalorder %v1757, 1
          %v1766 = vsel %vm1758, %v1655, %v1718
          %v1767 = vsel %vm1759, %v1658, %v1719
          %v1768 = vsel %vm1760, %v1663, %v1720
          %v1769 = vsel %vm1761, %v1666, %v1721
          %v1770 = vsel %vm1762, %v1671, %v1722
          %v1771 = vsel %vm1763, %v1674, %v1723
          %v1772 = vsel %vm1764, %v1679, %v1724
          %v1773 = vsel %vm1765, %v1682, %v1725
          %vm1774 = vcmask 130048
          %1775 = vst.msk [vmem:[#allocation3] sm:$0xff] %vm1774, %v1766
          %1776 = vst.msk [vmem:[#allocation3 + $0x8] sm:$0xff] %vm1774, %v1767
          %1777 = vst.msk [vmem:[#allocation3 + $0x10] sm:$0xff] %vm1774, %v1768
          %1778 = vst.msk [vmem:[#allocation3 + $0x18] sm:$0xff] %vm1774, %v1769
          %1779 = vst.msk [vmem:[#allocation3 + $0x20] sm:$0xff] %vm1774, %v1770
          %1780 = vst.msk [vmem:[#allocation3 + $0x28] sm:$0xff] %vm1774, %v1771
          %1781 = vst.msk [vmem:[#allocation3 + $0x30] sm:$0xff] %vm1774, %v1772
          %1782 = vst.msk [vmem:[#allocation3 + $0x38] sm:$0xff] %vm1774, %v1773
        $region68: #{tpu_custom_call.1} parent=55 // pred_fallthru
          _
        %p1783 = scmp.eq.s32.totalorder %s60, 2
        // Predicated region
        $region69: #{tpu_custom_call.1} parent=55 // pred_check
          %p1784 = pneg %p1783
        $region70: #{tpu_custom_call.1} parent=55 // pred_check_branch
          %1786 = sbr.rel (%p1784) target = $region72
        $region71: #{tpu_custom_call.1} parent=55 // pred_region
          %v1787 = vld [vmem:[%s598] sm:$0xf]
          %v1788 = vld [vmem:[%s598 + $0x4] sm:$0xf]
          %v1789 = vld [vmem:[%s598 + $0x8] sm:$0xf]
          %v1790 = vld [vmem:[%s598 + $0xc] sm:$0xf]
          %v1791 = vld [vmem:[%s598 + $0x10] sm:$0xf]
          %v1792 = vld [vmem:[%s598 + $0x14] sm:$0xf]
          %v1793 = vld [vmem:[%s598 + $0x18] sm:$0xf]
          %v1794 = vld [vmem:[%s598 + $0x1c] sm:$0xf]
          %v1795 = vld [vmem:[%s12] sm:$0xf]
          %v1796 = vld [vmem:[%s12 + $0x4] sm:$0xf]
          %v1797 = vld [vmem:[%s12 + $0x8] sm:$0xf]
          %v1798 = vld [vmem:[%s12 + $0xc] sm:$0xf]
          %v1799 = vld [vmem:[#allocation3] sm:$0xff]
          %v1800 = vld [vmem:[#allocation3 + $0x8] sm:$0xff]
          %v1801 = vld [vmem:[#allocation3 + $0x10] sm:$0xff]
          %v1802 = vld [vmem:[#allocation3 + $0x18] sm:$0xff]
          %v1803 = vld [vmem:[#allocation3 + $0x20] sm:$0xff]
          %v1804 = vld [vmem:[#allocation3 + $0x28] sm:$0xff]
          %v1805 = vld [vmem:[#allocation3 + $0x30] sm:$0xff]
          %v1806 = vld [vmem:[#allocation3 + $0x38] sm:$0xff]
          %v1807 = vpack.c.bf16 %v1800, %v1799
          %v1808 = vpack.c.bf16 %v1802, %v1801
          %v1809 = vpack.c.bf16 %v1804, %v1803
          %v1810 = vpack.c.bf16 %v1806, %v1805
          %v1811 = vld [vmem:[%s13] sm:$0xf]
          %v1812 = vld [vmem:[%s13 + $0x4] sm:$0xf]
          %v1815 = vunpack.c.l.b16 %v1811
          %v1816 = vunpack.c.l.b16 %v1812
          %v1817 = vpack.c.b16 %v1816, %v1815
          %vm1819 = vcmask 130048
          %v1821 = vsel %vm1819, %v1807, 0
          %v1824 = vsel %vm1819, %v1808, 0
          %v1827 = vsel %vm1819, %v1809, 0
          %v1830 = vsel %vm1819, %v1810, 0
          %1832 = vmatprep.subr.bf16.mxu0 0
          %1833 = vmatpush1.bf16.msra.mxu0 %v1817
          %1834 = vmatprep.subr.bf16.mxu0 0
          %1835 = vmatpush1.bf16.msra.mxu0 0
          %1836 = vmatprep.subr.bf16.mxu0 0
          %1837 = vmatpush1.bf16.msra.mxu0 0
          %1838 = vmatprep.subr.bf16.mxu0 0
          %1839 = vmatpush1.bf16.msra.mxu0 0
          %1840 = vmatprep.subr.bf16.mxu0 0
          %1841 = vmatpush1.bf16.msra.mxu0 0
          %1842 = vmatprep.subr.bf16.mxu0 0
          %1843 = vmatpush1.bf16.msra.mxu0 0
          %1844 = vmatprep.subr.bf16.mxu0 0
          %1845 = vmatpush1.bf16.msra.mxu0 0
          %1846 = vmatprep.subr.bf16.mxu0 0
          %1847 = vmatpush1.bf16.msra.mxu0 0
          %1848 = vmatprep.subr.bf16.mxu0 0
          %1849 = vmatpush1.bf16.msra.mxu0 0
          %1850 = vmatprep.subr.bf16.mxu0 0
          %1851 = vmatpush1.bf16.msra.mxu0 0
          %1852 = vmatprep.subr.bf16.mxu0 0
          %1853 = vmatpush1.bf16.msra.mxu0 0
          %1854 = vmatprep.subr.bf16.mxu0 0
          %1855 = vmatpush1.bf16.msra.mxu0 0
          %1856 = vmatprep.subr.bf16.mxu0 0
          %1857 = vmatpush1.bf16.msra.mxu0 0
          %1858 = vmatprep.subr.bf16.mxu0 0
          %1859 = vmatpush1.bf16.msra.mxu0 0
          %1860 = vmatprep.subr.bf16.mxu0 0
          %1861 = vmatpush1.bf16.msra.mxu0 0
          %1862 = vmatprep.subr.bf16.mxu0 0
          %1863 = vmatpush1.bf16.msra.mxu0 0
          %1864 = vmatprep.mubr.bf16.mxu0 0
          %1865 = vmatmul.mubr.bf16.gmra.mrb[0].mxu0 %v1821
          %v1866 = vpop.f32.mrb[0].mxu0
          %v1867 = vadd.f32 0.0, %v1866
          %v1868 = vpop.f32.mrb[0].mxu0
          %v1869 = vpop.f32.mrb[0].mxu0
          %v1870 = vadd.f32 0.0, %v1869
          %v1871 = vpop.f32.mrb[0].mxu0
          %1872 = vmatprep.mubr.bf16.mxu0 0
          %1873 = vmatmul.mubr.bf16.gmra.mrb[0].mxu0 %v1824
          %v1874 = vpop.f32.mrb[0].mxu0
          %v1875 = vadd.f32 0.0, %v1874
          %v1876 = vpop.f32.mrb[0].mxu0
          %v1877 = vpop.f32.mrb[0].mxu0
          %v1878 = vadd.f32 0.0, %v1877
          %v1879 = vpop.f32.mrb[0].mxu0
          %1880 = vmatprep.mubr.bf16.mxu0 0
          %1881 = vmatmul.mubr.bf16.gmra.mrb[0].mxu0 %v1827
          %v1882 = vpop.f32.mrb[0].mxu0
          %v1883 = vadd.f32 0.0, %v1882
          %v1884 = vpop.f32.mrb[0].mxu0
          %v1885 = vpop.f32.mrb[0].mxu0
          %v1886 = vadd.f32 0.0, %v1885
          %v1887 = vpop.f32.mrb[0].mxu0
          %1888 = vmatprep.mubr.bf16.mxu0 0
          %1889 = vmatmul.mubr.bf16.gmra.mrb[0].mxu0 %v1830
          %v1890 = vpop.f32.mrb[0].mxu0
          %v1891 = vadd.f32 0.0, %v1890
          %v1892 = vpop.f32.mrb[0].mxu0
          %v1893 = vpop.f32.mrb[0].mxu0
          %v1894 = vadd.f32 0.0, %v1893
          %v1895 = vpop.f32.mrb[0].mxu0
          %1896 = vdwg.mxu0
          %v1905 = vunpack.c.l.b16 %v1787
          %v1906 = vunpack.c.l.b16 %v1788
          %v1907 = vunpack.c.l.b16 %v1789
          %v1908 = vunpack.c.l.b16 %v1790
          %v1909 = vunpack.c.l.b16 %v1791
          %v1910 = vunpack.c.l.b16 %v1792
          %v1911 = vunpack.c.l.b16 %v1793
          %v1912 = vunpack.c.l.b16 %v1794
          %v1913 = vpack.c.b16 %v1906, %v1905
          %v1914 = vpack.c.b16 %v1908, %v1907
          %v1915 = vpack.c.b16 %v1910, %v1909
          %v1916 = vpack.c.b16 %v1912, %v1911
          %v1921 = vunpack.c.l.b16 %v1795
          %v1922 = vunpack.c.l.b16 %v1796
          %v1923 = vunpack.c.l.b16 %v1797
          %v1924 = vunpack.c.l.b16 %v1798
          %v1925 = vpack.c.b16 %v1922, %v1921
          %v1926 = vpack.c.b16 %v1924, %v1923
          %vm1929 = vcmask 261120
          %v1931 = vsel %vm1929, %v1913, 0
          %v1934 = vsel %vm1929, %v1914, 0
          %v1937 = vsel %vm1929, %v1915, 0
          %v1940 = vsel %vm1929, %v1916, 0
          %1942 = vmatprep.subr.bf16.mxu0 0
          %1943 = vmatpush1.bf16.msra.mxu0 %v1925
          %1944 = vmatprep.subr.bf16.mxu0 0
          %1945 = vmatpush1.bf16.msra.mxu0 %v1926
          %1946 = vmatprep.subr.bf16.mxu0 0
          %1947 = vmatpush1.bf16.msra.mxu0 0
          %1948 = vmatprep.subr.bf16.mxu0 0
          %1949 = vmatpush1.bf16.msra.mxu0 0
          %1950 = vmatprep.subr.bf16.mxu0 0
          %1951 = vmatpush1.bf16.msra.mxu0 0
          %1952 = vmatprep.subr.bf16.mxu0 0
          %1953 = vmatpush1.bf16.msra.mxu0 0
          %1954 = vmatprep.subr.bf16.mxu0 0
          %1955 = vmatpush1.bf16.msra.mxu0 0
          %1956 = vmatprep.subr.bf16.mxu0 0
          %1957 = vmatpush1.bf16.msra.mxu0 0
          %1958 = vmatprep.subr.bf16.mxu0 0
          %1959 = vmatpush1.bf16.msra.mxu0 0
          %1960 = vmatprep.subr.bf16.mxu0 0
          %1961 = vmatpush1.bf16.msra.mxu0 0
          %1962 = vmatprep.subr.bf16.mxu0 0
          %1963 = vmatpush1.bf16.msra.mxu0 0
          %1964 = vmatprep.subr.bf16.mxu0 0
          %1965 = vmatpush1.bf16.msra.mxu0 0
          %1966 = vmatprep.subr.bf16.mxu0 0
          %1967 = vmatpush1.bf16.msra.mxu0 0
          %1968 = vmatprep.subr.bf16.mxu0 0
          %1969 = vmatpush1.bf16.msra.mxu0 0
          %1970 = vmatprep.subr.bf16.mxu0 0
          %1971 = vmatpush1.bf16.msra.mxu0 0
          %1972 = vmatprep.subr.bf16.mxu0 0
          %1973 = vmatpush1.bf16.msra.mxu0 0
          %1974 = vmatprep.mubr.bf16.mxu0 0
          %1975 = vmatmul.mubr.bf16.gmra.mrb[0].mxu0 %v1931
          %v1976 = vpop.f32.mrb[0].mxu0
          %v1977 = vadd.f32 %v1867, %v1976
          %v1978 = vpop.f32.mrb[0].mxu0
          %v1979 = vpop.f32.mrb[0].mxu0
          %v1980 = vadd.f32 %v1870, %v1979
          %v1981 = vpop.f32.mrb[0].mxu0
          %1982 = vmatprep.mubr.bf16.mxu0 0
          %1983 = vmatmul.mubr.bf16.gmra.mrb[0].mxu0 %v1934
          %v1984 = vpop.f32.mrb[0].mxu0
          %v1985 = vadd.f32 %v1875, %v1984
          %v1986 = vpop.f32.mrb[0].mxu0
          %v1987 = vpop.f32.mrb[0].mxu0
          %v1988 = vadd.f32 %v1878, %v1987
          %v1989 = vpop.f32.mrb[0].mxu0
          %1990 = vmatprep.mubr.bf16.mxu0 0
          %1991 = vmatmul.mubr.bf16.gmra.mrb[0].mxu0 %v1937
          %v1992 = vpop.f32.mrb[0].mxu0
          %v1993 = vadd.f32 %v1883, %v1992
          %v1994 = vpop.f32.mrb[0].mxu0
          %v1995 = vpop.f32.mrb[0].mxu0
          %v1996 = vadd.f32 %v1886, %v1995
          %v1997 = vpop.f32.mrb[0].mxu0
          %1998 = vmatprep.mubr.bf16.mxu0 0
          %1999 = vmatmul.mubr.bf16.gmra.mrb[0].mxu0 %v1940
          %v2000 = vpop.f32.mrb[0].mxu0
          %v2001 = vadd.f32 %v1891, %v2000
          %v2002 = vpop.f32.mrb[0].mxu0
          %v2003 = vpop.f32.mrb[0].mxu0
          %v2004 = vadd.f32 %v1894, %v2003
          %v2005 = vpop.f32.mrb[0].mxu0
          %2006 = vdwg.mxu0
          %v2007 = vld [vmem:[%s14] sm:$0x1]
          %v2009 = vlaneseq
          %v2010 = vshrl.u32 %v2009, 7
          %v2011 = vsub.s32 0, %v2010
          %v2012 = vrot.slane %v2007, %v2011
          %v2014 = vadd.f32 %v1977, %v2012
          %v2015 = vadd.f32 %v1980, %v2012
          %v2016 = vadd.f32 %v1985, %v2012
          %v2017 = vadd.f32 %v1988, %v2012
          %v2018 = vadd.f32 %v1993, %v2012
          %v2019 = vadd.f32 %v1996, %v2012
          %v2020 = vadd.f32 %v2001, %v2012
          %v2021 = vadd.f32 %v2004, %v2012
          %2022 = vst [vmem:[%s532] sm:$0xff] %v2014
          %2023 = vst [vmem:[%s532 + $0x8] sm:$0xff] %v2015
          %2024 = vst [vmem:[%s532 + $0x10] sm:$0xff] %v2016
          %2025 = vst [vmem:[%s532 + $0x18] sm:$0xff] %v2017
          %2026 = vst [vmem:[%s532 + $0x20] sm:$0xff] %v2018
          %2027 = vst [vmem:[%s532 + $0x28] sm:$0xff] %v2019
          %2028 = vst [vmem:[%s532 + $0x30] sm:$0xff] %v2020
          %2029 = vst [vmem:[%s532 + $0x38] sm:$0xff] %v2021
        $region72: #{tpu_custom_call.1} parent=55 // pred_fallthru
          _
        %s2030 = sand.u32 %s330, 1
        %s2031 = scalar_lea.sflag [#allocation12], %s2030
        %s2032 = sand.u32 %s330, 1
        %s2033 = smul.addr %s2032, 64
        %s2034 = scalar_lea.vmem [#allocation11], %s2033
        // Predicated region
        $region73: #{tpu_custom_call.1} parent=55 // pred_check
          %p2035 = pneg %p340
        $region74: #{tpu_custom_call.1} parent=55 // pred_check_branch
          %2037 = sbr.rel (%p2035) target = $region76
        $region75: #{tpu_custom_call.1} parent=55 // pred_region
          %s2038 = smul.u32 8, %s59
          %s2040 = ssub.s32 1024, 1024
          %2041 = vsyncadd %s2031, %s2040
          %s2042 = smul.addr %s2038, 128
          %s2043 = scalar_lea.hbm %s15, %s2042
          %s2044 = sshll.u32 %s2034, 4
          %s2045 = int_to_ptr.vmem [resolvable:$true] %s2044
          %2050 = dma.vmem_to_hbm [thread:$0]  %s2045, 1024, %s2043, %s2031, 128, 128, 8
        $region76: #{tpu_custom_call.1} parent=55 // pred_fallthru
          _
      $region56: #{tpu_custom_call.1} parent=5 // pred_fallthru
        _
      %p2051 = scmp.le.s32.totalorder 2, %s50
      // Predicated region
      $region77: #{tpu_custom_call.1} parent=5 // pred_check
        %p2052 = pneg %p2051
      $region78: #{tpu_custom_call.1} parent=5 // pred_check_branch
        %2054 = sbr.rel (%p2052) target = $region80
      $region79: #{tpu_custom_call.1} parent=5 // pred_region
        %s2055 = ssub.s32 %s50, 2
        // Predicated region
        $region81: #{tpu_custom_call.1} parent=79 // pred_check
          %p2056 = pneg %p346
        $region82: #{tpu_custom_call.1} parent=79 // pred_check_branch
          %2058 = sbr.rel (%p2056) target = $region84
        $region83: #{tpu_custom_call.1} parent=79 // pred_region
          %s2059 = sand.u32 %s331, 1
          %s2060 = scalar_lea.sflag [#allocation12], %s2059
          %s2061 = sand.u32 %s331, 1
          %s2062 = smul.addr %s2061, 64
          %s2063 = scalar_lea.vmem [#allocation11], %s2062
          %2064 = dma.done %s2060, 1024
        $region84: #{tpu_custom_call.1} parent=79 // pred_fallthru
          _
      $region80: #{tpu_custom_call.1} parent=5 // pred_fallthru
        _
    $region6: #{tpu_custom_call.1} parent=1 // loop_footer
      %s54 = sadd.s32 1, %s50
    $region7: #{tpu_custom_call.1} parent=1 // loop_footer_branch
      %49 = sbr.rel target = $region3
    $region8: #{tpu_custom_call.1} parent=1 // loop_exit
      _
    %2065 = vsyncpa [#allocation12], 1
    %s2066 = scalar_lea.sflag [#allocation12], 1
    %2067 = vsyncpa %s2066, 1

</llo_original>
